<compile_context>
chip_gen: v6e
topology: v6e:2x2x1
jax: 0.10.0
libtpu: 0.0.40
codegen_flags: <defaults>
</compile_context>

<pallas_src>
import math
import functools

import jax
import jax.numpy as jnp
from jax.experimental import pallas as pl
from jax.experimental.pallas import tpu as pltpu


# ----------------------------- kernel ---------------------------------------


def _layer_norm(x, w, b, eps=1e-5):
    # single-pass statistics: E[x], E[x^2]
    mu = jnp.mean(x, axis=-1, keepdims=True)
    ms = jnp.mean(x * x, axis=-1, keepdims=True)
    var = jnp.maximum(ms - mu * mu, 0.0)
    return (x - mu) * jax.lax.rsqrt(var + eps) * w + b


def encoder_layer_kernel(*refs, nhead, fuse_embed, fuse_pool, emb_scale):
    it = iter(refs)
    x_ref = next(it)
    pe_ref = next(it) if fuse_embed else None
    mask_ref = next(it)
    ws = [next(it) for _ in range(12)]
    (wqkv_ref, bqkv_ref, wo_ref, bo_ref, ln1w_ref, ln1b_ref,
     w1_ref, b1_ref, w2_ref, b2_ref, ln2w_ref, ln2b_ref) = ws
    wd_ref = next(it) if fuse_pool else None
    bd_ref = next(it) if fuse_pool else None
    o_ref = next(it)

    x = x_ref[...].astype(jnp.float32)                  # (Bt, S, D)
    if fuse_embed:
        x = x * emb_scale + pe_ref[...]                 # fused embed-scale + pos-enc
    Bt, S, D = x.shape
    hd = D // nhead
    n = Bt * S
    x2 = x.reshape(n, D)                                # batch folded into matmul M dim

    # ---- fused QKV projection: one wide (n, D) @ (D, 3D) bf16 matmul ----
    qkv = jnp.dot(x2.astype(jnp.bfloat16), wqkv_ref[...],
                  preferred_element_type=jnp.float32) + bqkv_ref[...]   # (n, 3D) f32

    def split_heads(off):
        # (n, nhead*hd) slice -> head-major (nhead*Bt, S, hd); slices/stack in f32,
        # cast to bf16 only at the matmul boundary.
        parts = [qkv[:, off + h * hd: off + (h + 1) * hd] for h in range(nhead)]
        t = jnp.stack(parts, axis=0)                    # (nhead, n, hd)
        return t.reshape(nhead * Bt, S, hd).astype(jnp.bfloat16)

    q = split_heads(0)
    k = split_heads(D)
    v = split_heads(2 * D)

    # ---- scaled-dot-product attention (single leading batch dim, f32 softmax) ----
    s = jnp.einsum('bqd,bkd->bqk', q, k,
                   preferred_element_type=jnp.float32)               # (nhead*Bt, S, S)
    s = s * (1.0 / math.sqrt(hd)) + mask_ref[...][None, :, :]        # additive causal bias
    s = s - jnp.max(s, axis=-1, keepdims=True)
    p = jnp.exp(s)
    p = p * pl.reciprocal(jnp.sum(p, axis=-1, keepdims=True), approx=True)
    ctx = jnp.einsum('bqk,bkd->bqd', p.astype(jnp.bfloat16), v,
                     preferred_element_type=jnp.float32)             # (nhead*Bt, S, hd)

    # ---- output projection: concat heads along lanes -> one (n, D) @ (D, D) matmul ----
    ctx = ctx.reshape(nhead, n, hd)
    ctx2 = jnp.concatenate([ctx[h] for h in range(nhead)], axis=-1)  # (n, D)
    attn = jnp.dot(ctx2.astype(jnp.bfloat16), wo_ref[...],
                   preferred_element_type=jnp.float32) + bo_ref[...]

    # post-LN residual 1
    x2 = _layer_norm(x2 + attn, ln1w_ref[...], ln1b_ref[...])

    # ---- feed-forward (ReLU), bf16 operands, big-M dots ----
    h1 = jnp.dot(x2.astype(jnp.bfloat16), w1_ref[...],
                 preferred_element_type=jnp.float32) + b1_ref[...]
    h1 = jnp.maximum(h1, 0.0)
    ff = jnp.dot(h1.astype(jnp.bfloat16), w2_ref[...],
                 preferred_element_type=jnp.float32) + b2_ref[...]

    # post-LN residual 2
    x2 = _layer_norm(x2 + ff, ln2w_ref[...], ln2b_ref[...])

    if fuse_pool:
        # fused mean-pool over sequence + decoder; lane-padded output block
        pooled = jnp.mean(x2.reshape(Bt, S, D), axis=1)              # (Bt, D)
        logits = jnp.dot(pooled.astype(jnp.bfloat16), wd_ref[...],
                         preferred_element_type=jnp.float32) + bd_ref[...]
        o_ref[...] = logits.reshape(Bt, 1, logits.shape[-1]).astype(o_ref.dtype)
    else:
        o_ref[...] = x2.reshape(Bt, S, D).astype(o_ref.dtype)        # bf16 HBM round trip


# ----------------------------- wrapper ---------------------------------------


def _vmem_limit_bytes():
    # generation-aware: ~75% of physical VMEM (=> ~96 MiB on v5e/v6e, ~48 MiB on v7x)
    try:
        cap = int(pltpu.get_tpu_info().vmem_capacity_bytes)
    except Exception:
        cap = 128 * 1024 * 1024
    return min(cap * 3 // 4, 100 * 1024 * 1024)


def _invariant_spec(arr):
    # grid-invariant (weight / pe / mask) block: whole array, constant block index
    nd = arr.ndim
    return pl.BlockSpec(arr.shape, lambda b, _nd=nd: (0,) * _nd)


_WEIGHT_KEYS = ('w_qkv', 'b_qkv', 'wo', 'bo', 'ln1w', 'ln1b',
                'w1', 'b1', 'w2', 'b2', 'ln2w', 'ln2b')


def encoder_layer(x, layer_p, mask, *, nhead, block_b, pe=None, emb_scale=1.0,
                  pool_w=None, pool_b=None):
    B, S, D = x.shape
    fuse_embed = pe is not None
    fuse_pool = pool_w is not None
    assert B % block_b == 0

    inputs = [x]
    in_specs = [pl.BlockSpec((block_b, S, D), lambda b: (b, 0, 0))]
    if fuse_embed:
        inputs.append(pe)
        in_specs.append(_invariant_spec(pe))
    inputs.append(mask)
    in_specs.append(_invariant_spec(mask))
    for key in _WEIGHT_KEYS:
        w = layer_p[key]
        inputs.append(w)
        in_specs.append(_invariant_spec(w))
    if fuse_pool:
        inputs += [pool_w, pool_b]
        in_specs += [_invariant_spec(pool_w), _invariant_spec(pool_b)]
        n_out = pool_w.shape[1]
        out_shape = jax.ShapeDtypeStruct((B, 1, n_out), jnp.float32)
        out_spec = pl.BlockSpec((block_b, 1, n_out), lambda b: (b, 0, 0))
    else:
        out_shape = jax.ShapeDtypeStruct((B, S, D), jnp.bfloat16)
        out_spec = pl.BlockSpec((block_b, S, D), lambda b: (b, 0, 0))

    kernel = functools.partial(
        encoder_layer_kernel, nhead=nhead, fuse_embed=fuse_embed,
        fuse_pool=fuse_pool, emb_scale=emb_scale)

    return pl.pallas_call(
        kernel,
        out_shape=out_shape,
        grid=(B // block_b,),
        in_specs=in_specs,
        out_specs=out_spec,
        compiler_params=pltpu.CompilerParams(
            dimension_semantics=("parallel",),
            vmem_limit_bytes=_vmem_limit_bytes()),
    )(*inputs)


def transformer_forward(src, params, *, d_model, nhead, ntoken, block_b=None):
    B, S = src.shape
    if block_b is None:
        # >= 2 grid steps so the "parallel" batch-block axis can use both v7x TensorCores
        block_b = B // 2 if (B % 2 == 0 and B >= 2) else B
    # embedding gather is data-dependent; kept as plain-JAX glue feeding the first kernel
    emb = params['embedding'][src]                      # (B, S, D) f32
    pe = params['pe'][:S]                               # (S, D)
    # causal mask as additive bias (0 / -1e30), grid-invariant kernel input
    mask = jnp.triu(jnp.full((S, S), -1e30, dtype=jnp.float32), k=1)
    nlayers = len(params['layers'])
    x = emb
    for li, lp in enumerate(params['layers']):
        first = (li == 0)
        last = (li == nlayers - 1)
        x = encoder_layer(
            x, lp, mask, nhead=nhead, block_b=block_b,
            pe=pe if first else None,
            emb_scale=math.sqrt(d_model) if first else 1.0,
            pool_w=params['decoder_w'] if last else None,
            pool_b=params['decoder_b'] if last else None)
    return x[:, 0, :ntoken]                             # drop decoder lane padding


# ----------------------------- parameter init ---------------------------------


def make_positional_encoding(max_len, d_model):
    position = jnp.arange(max_len, dtype=jnp.float32)[:, None]
    div_term = jnp.exp(jnp.arange(0, d_model, 2, dtype=jnp.float32)
                       * (-math.log(10000.0) / d_model))
    pe = jnp.zeros((max_len, d_model), jnp.float32)
    pe = pe.at[:, 0::2].set(jnp.sin(position * div_term))
    pe = pe.at[:, 1::2].set(jnp.cos(position * div_term))
    return pe


def _round_up(x, m):
    return (x + m - 1) // m * m


def init_params(key, *, vocab_size, ntoken, d_model, nhead, d_hid, nlayers, max_len):
    """Weights created directly in kernel layout:
       * fused QKV weight (D, 3D) = [Wq^T | Wk^T | Wv^T] (columns grouped q/k/v, then head);
       * dense out-proj weight (D, D) = out_proj.weight.T (rows grouped by head);
       * all Linear weights pre-transposed to (in_features, out_features);
       * matmul weights stored bf16 (biases / LN params f32);
       * decoder weight zero-padded to a lane-dense multiple of 128 output columns."""
    assert d_model % nhead == 0
    initrange = 0.1
    n_pad = _round_up(ntoken, 128)
    wdt = jnp.bfloat16

    def u(k, shape, scale=initrange):
        return jax.random.uniform(k, shape, jnp.float32, -scale, scale)

    keys = jax.random.split(key, 2 + nlayers)
    dec_w = jnp.zeros((d_model, n_pad), jnp.float32)
    dec_w = dec_w.at[:, :ntoken].set(u(keys[1], (d_model, ntoken)))
    params = {
        'embedding': u(keys[0], (vocab_size, d_model)),
        'pe': make_positional_encoding(max_len, d_model),
        'decoder_w': dec_w.astype(wdt),
        'decoder_b': jnp.zeros((1, n_pad), jnp.float32),
        'layers': [],
    }
    for li in range(nlayers):
        lk = jax.random.split(keys[2 + li], 4)
        params['layers'].append({
            'w_qkv': u(lk[0], (d_model, 3 * d_model)).astype(wdt),
            'b_qkv': jnp.zeros((1, 3 * d_model), jnp.float32),
            'wo': u(lk[1], (d_model, d_model)).astype(wdt),
            'bo': jnp.zeros((1, d_model), jnp.float32),
            'ln1w': jnp.ones((1, d_model), jnp.float32),
            'ln1b': jnp.zeros((1, d_model), jnp.float32),
            'w1': u(lk[2], (d_model, d_hid)).astype(wdt),
            'b1': jnp.zeros((1, d_hid), jnp.float32),
            'w2': u(lk[3], (d_hid, d_model)).astype(wdt),
            'b2': jnp.zeros((1, d_model), jnp.float32),
            'ln2w': jnp.ones((1, d_model), jnp.float32),
            'ln2b': jnp.zeros((1, d_model), jnp.float32),
        })
    return params


# ----------------------------- main --------------------------------------------


if __name__ == "__main__":
    # small config
    B, squ_len = 2, 8
    vocab_size, ntoken = 50, 10
    d_model, nhead, d_hid, nlayers = 32, 4, 64, 2

    key = jax.random.PRNGKey(0)
    pkey, dkey = jax.random.split(key)
    params = init_params(pkey, vocab_size=vocab_size, ntoken=ntoken,
                         d_model=d_model, nhead=nhead, d_hid=d_hid,
                         nlayers=nlayers, max_len=1000)

    src = jax.random.randint(dkey, (B, squ_len), 0, vocab_size, dtype=jnp.int32)

    out = transformer_forward(src, params, d_model=d_model, nhead=nhead,
                              ntoken=ntoken)
    out = jax.block_until_ready(out)
    assert out.shape == (B, ntoken), out.shape
    assert bool(jnp.all(jnp.isfinite(out)))
    print("KERNEL_OK")
</pallas_src>

<mosaic_0001>
module attributes {stable_mosaic.version = 11 : i64} {
  func.func @encoder_layer_kernel(%arg0: i32, %arg1: memref<1x8x32xf32, #tpu.memory_space<vmem>>, %arg2: memref<8x32xf32, #tpu.memory_space<vmem>>, %arg3: memref<8x8xf32, #tpu.memory_space<vmem>>, %arg4: memref<32x96xbf16, #tpu.memory_space<vmem>>, %arg5: memref<1x96xf32, #tpu.memory_space<vmem>>, %arg6: memref<32x32xbf16, #tpu.memory_space<vmem>>, %arg7: memref<1x32xf32, #tpu.memory_space<vmem>>, %arg8: memref<1x32xf32, #tpu.memory_space<vmem>>, %arg9: memref<1x32xf32, #tpu.memory_space<vmem>>, %arg10: memref<32x64xbf16, #tpu.memory_space<vmem>>, %arg11: memref<1x64xf32, #tpu.memory_space<vmem>>, %arg12: memref<64x32xbf16, #tpu.memory_space<vmem>>, %arg13: memref<1x32xf32, #tpu.memory_space<vmem>>, %arg14: memref<1x32xf32, #tpu.memory_space<vmem>>, %arg15: memref<1x32xf32, #tpu.memory_space<vmem>>, %arg16: memref<1x8x32xbf16, #tpu.memory_space<vmem>>) attributes {dimension_semantics = [#tpu.dimension_semantics<parallel>], iteration_bounds = array<i64: 2>, scalar_prefetch = 0 : i64, scratch_operands = 0 : i64, tpu.core_type = #tpu.core_type<tc>, window_params = [{transform_indices = @transform_0, window_bounds = array<i64: 1, 8, 32>}, {pipeline_mode = #tpu.pipeline_mode<synchronous>, transform_indices = @transform_1, window_bounds = array<i64: 8, 32>}, {pipeline_mode = #tpu.pipeline_mode<synchronous>, transform_indices = @transform_2, window_bounds = array<i64: 8, 8>}, {pipeline_mode = #tpu.pipeline_mode<synchronous>, transform_indices = @transform_3, window_bounds = array<i64: 32, 96>}, {pipeline_mode = #tpu.pipeline_mode<synchronous>, transform_indices = @transform_4, window_bounds = array<i64: 1, 96>}, {pipeline_mode = #tpu.pipeline_mode<synchronous>, transform_indices = @transform_5, window_bounds = array<i64: 32, 32>}, {pipeline_mode = #tpu.pipeline_mode<synchronous>, transform_indices = @transform_6, window_bounds = array<i64: 1, 32>}, {pipeline_mode = #tpu.pipeline_mode<synchronous>, transform_indices = @transform_7, window_bounds = array<i64: 1, 32>}, {pipeline_mode = #tpu.pipeline_mode<synchronous>, transform_indices = @transform_8, window_bounds = array<i64: 1, 32>}, {pipeline_mode = #tpu.pipeline_mode<synchronous>, transform_indices = @transform_9, window_bounds = array<i64: 32, 64>}, {pipeline_mode = #tpu.pipeline_mode<synchronous>, transform_indices = @transform_10, window_bounds = array<i64: 1, 64>}, {pipeline_mode = #tpu.pipeline_mode<synchronous>, transform_indices = @transform_11, window_bounds = array<i64: 64, 32>}, {pipeline_mode = #tpu.pipeline_mode<synchronous>, transform_indices = @transform_12, window_bounds = array<i64: 1, 32>}, {pipeline_mode = #tpu.pipeline_mode<synchronous>, transform_indices = @transform_13, window_bounds = array<i64: 1, 32>}, {pipeline_mode = #tpu.pipeline_mode<synchronous>, transform_indices = @transform_14, window_bounds = array<i64: 1, 32>}, {transform_indices = @transform_15, window_bounds = array<i64: 1, 8, 32>}]} {
    %c0 = arith.constant 0 : index
    %c0_0 = arith.constant 0 : index
    %c0_1 = arith.constant 0 : index
    %0 = vector.load %arg1[%c0, %c0_0, %c0_1] : memref<1x8x32xf32, #tpu.memory_space<vmem>>, vector<1x8x32xf32>
    %cst = arith.constant 5.65685415 : f32
    %1 = vector.broadcast %cst : f32 to vector<1x8x32xf32>
    %2 = arith.mulf %0, %1 : vector<1x8x32xf32>
    %c0_2 = arith.constant 0 : index
    %c0_3 = arith.constant 0 : index
    %3 = vector.load %arg2[%c0_2, %c0_3] : memref<8x32xf32, #tpu.memory_space<vmem>>, vector<8x32xf32>
    %4 = vector.shape_cast %3 : vector<8x32xf32> to vector<1x8x32xf32>
    %5 = arith.addf %2, %4 : vector<1x8x32xf32>
    %6 = vector.shape_cast %5 : vector<1x8x32xf32> to vector<8x32xf32>
    %7 = arith.truncf %6 : vector<8x32xf32> to vector<8x32xbf16>
    %c0_4 = arith.constant 0 : index
    %c0_5 = arith.constant 0 : index
    %8 = vector.load %arg4[%c0_4, %c0_5] : memref<32x96xbf16, #tpu.memory_space<vmem>>, vector<32x96xbf16>
    %cst_6 = arith.constant dense<0.000000e+00> : vector<8x96xf32>
    %9 = tpu.matmul %7, %8, %cst_6 {dimension_numbers = #tpu.dot_dimension_numbers<[1], [0], [0], [1], [0, 0, 1, 1], [], []>} : vector<8x32xbf16>, vector<32x96xbf16>, vector<8x96xf32> -> vector<8x96xf32>
    %c0_7 = arith.constant 0 : index
    %c0_8 = arith.constant 0 : index
    %10 = vector.load %arg5[%c0_7, %c0_8] : memref<1x96xf32, #tpu.memory_space<vmem>>, vector<1x96xf32>
    %11 = vector.broadcast %10 : vector<1x96xf32> to vector<8x96xf32>
    %12 = arith.addf %9, %11 : vector<8x96xf32>
    %13 = vector.extract_strided_slice %12 {offsets = [0, 0], sizes = [8, 8], strides = [1, 1]} : vector<8x96xf32> to vector<8x8xf32>
    %14 = vector.extract_strided_slice %12 {offsets = [0, 8], sizes = [8, 8], strides = [1, 1]} : vector<8x96xf32> to vector<8x8xf32>
    %15 = vector.extract_strided_slice %12 {offsets = [0, 16], sizes = [8, 8], strides = [1, 1]} : vector<8x96xf32> to vector<8x8xf32>
    %16 = vector.extract_strided_slice %12 {offsets = [0, 24], sizes = [8, 8], strides = [1, 1]} : vector<8x96xf32> to vector<8x8xf32>
    %17 = vector.shape_cast %13 : vector<8x8xf32> to vector<1x8x8xf32>
    %18 = vector.shape_cast %14 : vector<8x8xf32> to vector<1x8x8xf32>
    %19 = vector.shape_cast %15 : vector<8x8xf32> to vector<1x8x8xf32>
    %20 = vector.shape_cast %16 : vector<8x8xf32> to vector<1x8x8xf32>
    %21 = tpu.concatenate %17, %18, %19, %20 in 0 : vector<1x8x8xf32>, vector<1x8x8xf32>, vector<1x8x8xf32>, vector<1x8x8xf32> -> vector<4x8x8xf32>
    %22 = arith.truncf %21 : vector<4x8x8xf32> to vector<4x8x8xbf16>
    %23 = vector.extract_strided_slice %12 {offsets = [0, 32], sizes = [8, 8], strides = [1, 1]} : vector<8x96xf32> to vector<8x8xf32>
    %24 = vector.extract_strided_slice %12 {offsets = [0, 40], sizes = [8, 8], strides = [1, 1]} : vector<8x96xf32> to vector<8x8xf32>
    %25 = vector.extract_strided_slice %12 {offsets = [0, 48], sizes = [8, 8], strides = [1, 1]} : vector<8x96xf32> to vector<8x8xf32>
    %26 = vector.extract_strided_slice %12 {offsets = [0, 56], sizes = [8, 8], strides = [1, 1]} : vector<8x96xf32> to vector<8x8xf32>
    %27 = vector.shape_cast %23 : vector<8x8xf32> to vector<1x8x8xf32>
    %28 = vector.shape_cast %24 : vector<8x8xf32> to vector<1x8x8xf32>
    %29 = vector.shape_cast %25 : vector<8x8xf32> to vector<1x8x8xf32>
    %30 = vector.shape_cast %26 : vector<8x8xf32> to vector<1x8x8xf32>
    %31 = tpu.concatenate %27, %28, %29, %30 in 0 : vector<1x8x8xf32>, vector<1x8x8xf32>, vector<1x8x8xf32>, vector<1x8x8xf32> -> vector<4x8x8xf32>
    %32 = arith.truncf %31 : vector<4x8x8xf32> to vector<4x8x8xbf16>
    %33 = vector.extract_strided_slice %12 {offsets = [0, 64], sizes = [8, 8], strides = [1, 1]} : vector<8x96xf32> to vector<8x8xf32>
    %34 = vector.extract_strided_slice %12 {offsets = [0, 72], sizes = [8, 8], strides = [1, 1]} : vector<8x96xf32> to vector<8x8xf32>
    %35 = vector.extract_strided_slice %12 {offsets = [0, 80], sizes = [8, 8], strides = [1, 1]} : vector<8x96xf32> to vector<8x8xf32>
    %36 = vector.extract_strided_slice %12 {offsets = [0, 88], sizes = [8, 8], strides = [1, 1]} : vector<8x96xf32> to vector<8x8xf32>
    %37 = vector.shape_cast %33 : vector<8x8xf32> to vector<1x8x8xf32>
    %38 = vector.shape_cast %34 : vector<8x8xf32> to vector<1x8x8xf32>
    %39 = vector.shape_cast %35 : vector<8x8xf32> to vector<1x8x8xf32>
    %40 = vector.shape_cast %36 : vector<8x8xf32> to vector<1x8x8xf32>
    %41 = tpu.concatenate %37, %38, %39, %40 in 0 : vector<1x8x8xf32>, vector<1x8x8xf32>, vector<1x8x8xf32>, vector<1x8x8xf32> -> vector<4x8x8xf32>
    %42 = arith.truncf %41 : vector<4x8x8xf32> to vector<4x8x8xbf16>
    "tpu.trace_start"() <{level = 10 : i32, message = "bqd,bkd->bqk"}> : () -> ()
    %cst_9 = arith.constant dense<0.000000e+00> : vector<4x8x8xf32>
    %43 = tpu.matmul %22, %32, %cst_9 {dimension_numbers = #tpu.dot_dimension_numbers<[2], [2], [1], [1], [0, 0, 0, 1, 1, 1], [0], [0]>} : vector<4x8x8xbf16>, vector<4x8x8xbf16>, vector<4x8x8xf32> -> vector<4x8x8xf32>
    "tpu.trace_stop"() : () -> ()
    %cst_10 = arith.constant 0.353553385 : f32
    %44 = vector.broadcast %cst_10 : f32 to vector<4x8x8xf32>
    %45 = arith.mulf %43, %44 : vector<4x8x8xf32>
    %c0_11 = arith.constant 0 : index
    %c0_12 = arith.constant 0 : index
    %46 = vector.load %arg3[%c0_11, %c0_12] : memref<8x8xf32, #tpu.memory_space<vmem>>, vector<8x8xf32>
    %47 = vector.shape_cast %46 : vector<8x8xf32> to vector<1x8x8xf32>
    %48 = vector.broadcast %47 : vector<1x8x8xf32> to vector<4x8x8xf32>
    %49 = arith.addf %45, %48 : vector<4x8x8xf32>
    %cst_13 = arith.constant dense<0xFF800000> : vector<4x8xf32>
    %50 = vector.multi_reduction <maximumf>, %49, %cst_13 [2] : vector<4x8x8xf32> to vector<4x8xf32>
    %51 = vector.shape_cast %50 : vector<4x8xf32> to vector<4x8x1xf32>
    %52 = vector.broadcast %51 : vector<4x8x1xf32> to vector<4x8x8xf32>
    %53 = arith.subf %49, %52 : vector<4x8x8xf32>
    %54 = math.exp %53 : vector<4x8x8xf32>
    %cst_14 = arith.constant dense<0.000000e+00> : vector<4x8xf32>
    %55 = vector.multi_reduction <add>, %54, %cst_14 [2] : vector<4x8x8xf32> to vector<4x8xf32>
    %56 = vector.shape_cast %55 : vector<4x8xf32> to vector<4x8x1xf32>
    %57 = tpu.reciprocal %56 {approx = true} : vector<4x8x1xf32> -> vector<4x8x1xf32>
    %58 = vector.broadcast %57 : vector<4x8x1xf32> to vector<4x8x8xf32>
    %59 = arith.mulf %54, %58 : vector<4x8x8xf32>
    %60 = arith.truncf %59 : vector<4x8x8xf32> to vector<4x8x8xbf16>
    "tpu.trace_start"() <{level = 10 : i32, message = "bqk,bkd->bqd"}> : () -> ()
    %cst_15 = arith.constant dense<0.000000e+00> : vector<4x8x8xf32>
    %61 = tpu.matmul %60, %42, %cst_15 {dimension_numbers = #tpu.dot_dimension_numbers<[2], [1], [1], [2], [0, 0, 0, 1, 1, 2], [0], [0]>} : vector<4x8x8xbf16>, vector<4x8x8xbf16>, vector<4x8x8xf32> -> vector<4x8x8xf32>
    "tpu.trace_stop"() : () -> ()
    %62 = vector.extract_strided_slice %61 {offsets = [0, 0, 0], sizes = [1, 8, 8], strides = [1, 1, 1]} : vector<4x8x8xf32> to vector<1x8x8xf32>
    %63 = vector.shape_cast %62 : vector<1x8x8xf32> to vector<8x8xf32>
    %64 = vector.extract_strided_slice %61 {offsets = [1, 0, 0], sizes = [1, 8, 8], strides = [1, 1, 1]} : vector<4x8x8xf32> to vector<1x8x8xf32>
    %65 = vector.shape_cast %64 : vector<1x8x8xf32> to vector<8x8xf32>
    %66 = vector.extract_strided_slice %61 {offsets = [2, 0, 0], sizes = [1, 8, 8], strides = [1, 1, 1]} : vector<4x8x8xf32> to vector<1x8x8xf32>
    %67 = vector.shape_cast %66 : vector<1x8x8xf32> to vector<8x8xf32>
    %68 = vector.extract_strided_slice %61 {offsets = [3, 0, 0], sizes = [1, 8, 8], strides = [1, 1, 1]} : vector<4x8x8xf32> to vector<1x8x8xf32>
    %69 = vector.shape_cast %68 : vector<1x8x8xf32> to vector<8x8xf32>
    %70 = tpu.concatenate %63, %65, %67, %69 in 1 : vector<8x8xf32>, vector<8x8xf32>, vector<8x8xf32>, vector<8x8xf32> -> vector<8x32xf32>
    %71 = arith.truncf %70 : vector<8x32xf32> to vector<8x32xbf16>
    %c0_16 = arith.constant 0 : index
    %c0_17 = arith.constant 0 : index
    %72 = vector.load %arg6[%c0_16, %c0_17] : memref<32x32xbf16, #tpu.memory_space<vmem>>, vector<32x32xbf16>
    %cst_18 = arith.constant dense<0.000000e+00> : vector<8x32xf32>
    %73 = tpu.matmul %71, %72, %cst_18 {dimension_numbers = #tpu.dot_dimension_numbers<[1], [0], [0], [1], [0, 0, 1, 1], [], []>} : vector<8x32xbf16>, vector<32x32xbf16>, vector<8x32xf32> -> vector<8x32xf32>
    %c0_19 = arith.constant 0 : index
    %c0_20 = arith.constant 0 : index
    %74 = vector.load %arg7[%c0_19, %c0_20] : memref<1x32xf32, #tpu.memory_space<vmem>>, vector<1x32xf32>
    %75 = vector.broadcast %74 : vector<1x32xf32> to vector<8x32xf32>
    %76 = arith.addf %73, %75 : vector<8x32xf32>
    %77 = arith.addf %6, %76 : vector<8x32xf32>
    %c0_21 = arith.constant 0 : index
    %c0_22 = arith.constant 0 : index
    %78 = vector.load %arg8[%c0_21, %c0_22] : memref<1x32xf32, #tpu.memory_space<vmem>>, vector<1x32xf32>
    %c0_23 = arith.constant 0 : index
    %c0_24 = arith.constant 0 : index
    %79 = vector.load %arg9[%c0_23, %c0_24] : memref<1x32xf32, #tpu.memory_space<vmem>>, vector<1x32xf32>
    %cst_25 = arith.constant dense<0.000000e+00> : vector<8xf32>
    %80 = vector.multi_reduction <add>, %77, %cst_25 [1] : vector<8x32xf32> to vector<8xf32>
    %81 = vector.shape_cast %80 : vector<8xf32> to vector<8x1xf32>
    %cst_26 = arith.constant 3.200000e+01 : f32
    %82 = vector.broadcast %cst_26 : f32 to vector<8x1xf32>
    %83 = arith.divf %81, %82 : vector<8x1xf32>
    %84 = arith.mulf %77, %77 : vector<8x32xf32>
    %cst_27 = arith.constant dense<0.000000e+00> : vector<8xf32>
    %85 = vector.multi_reduction <add>, %84, %cst_27 [1] : vector<8x32xf32> to vector<8xf32>
    %86 = vector.shape_cast %85 : vector<8xf32> to vector<8x1xf32>
    %cst_28 = arith.constant 3.200000e+01 : f32
    %87 = vector.broadcast %cst_28 : f32 to vector<8x1xf32>
    %88 = arith.divf %86, %87 : vector<8x1xf32>
    %89 = arith.mulf %83, %83 : vector<8x1xf32>
    %90 = arith.subf %88, %89 : vector<8x1xf32>
    %cst_29 = arith.constant 0.000000e+00 : f32
    %91 = vector.broadcast %cst_29 : f32 to vector<8x1xf32>
    %92 = arith.maximumf %90, %91 : vector<8x1xf32>
    %93 = vector.broadcast %83 : vector<8x1xf32> to vector<8x32xf32>
    %94 = arith.subf %77, %93 : vector<8x32xf32>
    %cst_30 = arith.constant 9.99999974E-6 : f32
    %95 = vector.broadcast %cst_30 : f32 to vector<8x1xf32>
    %96 = arith.addf %92, %95 : vector<8x1xf32>
    %97 = math.rsqrt %96 : vector<8x1xf32>
    %98 = vector.broadcast %97 : vector<8x1xf32> to vector<8x32xf32>
    %99 = arith.mulf %94, %98 : vector<8x32xf32>
    %100 = vector.broadcast %78 : vector<1x32xf32> to vector<8x32xf32>
    %101 = arith.mulf %99, %100 : vector<8x32xf32>
    %102 = vector.broadcast %79 : vector<1x32xf32> to vector<8x32xf32>
    %103 = arith.addf %101, %102 : vector<8x32xf32>
    %104 = arith.truncf %103 : vector<8x32xf32> to vector<8x32xbf16>
    %c0_31 = arith.constant 0 : index
    %c0_32 = arith.constant 0 : index
    %105 = vector.load %arg10[%c0_31, %c0_32] : memref<32x64xbf16, #tpu.memory_space<vmem>>, vector<32x64xbf16>
    %cst_33 = arith.constant dense<0.000000e+00> : vector<8x64xf32>
    %106 = tpu.matmul %104, %105, %cst_33 {dimension_numbers = #tpu.dot_dimension_numbers<[1], [0], [0], [1], [0, 0, 1, 1], [], []>} : vector<8x32xbf16>, vector<32x64xbf16>, vector<8x64xf32> -> vector<8x64xf32>
    %c0_34 = arith.constant 0 : index
    %c0_35 = arith.constant 0 : index
    %107 = vector.load %arg11[%c0_34, %c0_35] : memref<1x64xf32, #tpu.memory_space<vmem>>, vector<1x64xf32>
    %108 = vector.broadcast %107 : vector<1x64xf32> to vector<8x64xf32>
    %109 = arith.addf %106, %108 : vector<8x64xf32>
    %cst_36 = arith.constant 0.000000e+00 : f32
    %110 = vector.broadcast %cst_36 : f32 to vector<8x64xf32>
    %111 = arith.maximumf %109, %110 : vector<8x64xf32>
    %112 = arith.truncf %111 : vector<8x64xf32> to vector<8x64xbf16>
    %c0_37 = arith.constant 0 : index
    %c0_38 = arith.constant 0 : index
    %113 = vector.load %arg12[%c0_37, %c0_38] : memref<64x32xbf16, #tpu.memory_space<vmem>>, vector<64x32xbf16>
    %cst_39 = arith.constant dense<0.000000e+00> : vector<8x32xf32>
    %114 = tpu.matmul %112, %113, %cst_39 {dimension_numbers = #tpu.dot_dimension_numbers<[1], [0], [0], [1], [0, 0, 1, 1], [], []>} : vector<8x64xbf16>, vector<64x32xbf16>, vector<8x32xf32> -> vector<8x32xf32>
    %c0_40 = arith.constant 0 : index
    %c0_41 = arith.constant 0 : index
    %115 = vector.load %arg13[%c0_40, %c0_41] : memref<1x32xf32, #tpu.memory_space<vmem>>, vector<1x32xf32>
    %116 = vector.broadcast %115 : vector<1x32xf32> to vector<8x32xf32>
    %117 = arith.addf %114, %116 : vector<8x32xf32>
    %118 = arith.addf %103, %117 : vector<8x32xf32>
    %c0_42 = arith.constant 0 : index
    %c0_43 = arith.constant 0 : index
    %119 = vector.load %arg14[%c0_42, %c0_43] : memref<1x32xf32, #tpu.memory_space<vmem>>, vector<1x32xf32>
    %c0_44 = arith.constant 0 : index
    %c0_45 = arith.constant 0 : index
    %120 = vector.load %arg15[%c0_44, %c0_45] : memref<1x32xf32, #tpu.memory_space<vmem>>, vector<1x32xf32>
    %cst_46 = arith.constant dense<0.000000e+00> : vector<8xf32>
    %121 = vector.multi_reduction <add>, %118, %cst_46 [1] : vector<8x32xf32> to vector<8xf32>
    %122 = vector.shape_cast %121 : vector<8xf32> to vector<8x1xf32>
    %cst_47 = arith.constant 3.200000e+01 : f32
    %123 = vector.broadcast %cst_47 : f32 to vector<8x1xf32>
    %124 = arith.divf %122, %123 : vector<8x1xf32>
    %125 = arith.mulf %118, %118 : vector<8x32xf32>
    %cst_48 = arith.constant dense<0.000000e+00> : vector<8xf32>
    %126 = vector.multi_reduction <add>, %125, %cst_48 [1] : vector<8x32xf32> to vector<8xf32>
    %127 = vector.shape_cast %126 : vector<8xf32> to vector<8x1xf32>
    %cst_49 = arith.constant 3.200000e+01 : f32
    %128 = vector.broadcast %cst_49 : f32 to vector<8x1xf32>
    %129 = arith.divf %127, %128 : vector<8x1xf32>
    %130 = arith.mulf %124, %124 : vector<8x1xf32>
    %131 = arith.subf %129, %130 : vector<8x1xf32>
    %cst_50 = arith.constant 0.000000e+00 : f32
    %132 = vector.broadcast %cst_50 : f32 to vector<8x1xf32>
    %133 = arith.maximumf %131, %132 : vector<8x1xf32>
    %134 = vector.broadcast %124 : vector<8x1xf32> to vector<8x32xf32>
    %135 = arith.subf %118, %134 : vector<8x32xf32>
    %cst_51 = arith.constant 9.99999974E-6 : f32
    %136 = vector.broadcast %cst_51 : f32 to vector<8x1xf32>
    %137 = arith.addf %133, %136 : vector<8x1xf32>
    %138 = math.rsqrt %137 : vector<8x1xf32>
    %139 = vector.broadcast %138 : vector<8x1xf32> to vector<8x32xf32>
    %140 = arith.mulf %135, %139 : vector<8x32xf32>
    %141 = vector.broadcast %119 : vector<1x32xf32> to vector<8x32xf32>
    %142 = arith.mulf %140, %141 : vector<8x32xf32>
    %143 = vector.broadcast %120 : vector<1x32xf32> to vector<8x32xf32>
    %144 = arith.addf %142, %143 : vector<8x32xf32>
    %145 = vector.shape_cast %144 : vector<8x32xf32> to vector<1x8x32xf32>
    %146 = arith.truncf %145 : vector<1x8x32xf32> to vector<1x8x32xbf16>
    %c0_52 = arith.constant 0 : index
    %c0_53 = arith.constant 0 : index
    %c0_54 = arith.constant 0 : index
    %147 = vector.load %arg16[%c0_52, %c0_53, %c0_54] : memref<1x8x32xbf16, #tpu.memory_space<vmem>>, vector<1x8x32xbf16>
    tpu.vector_store %arg16[%c0_52, %c0_53, %c0_54], %146 {strides = array<i32>} : memref<1x8x32xbf16, #tpu.memory_space<vmem>>, vector<1x8x32xbf16>,
    return
  }
  func.func @transform_0(%arg0: i32) -> (i32, i32, i32) {
    %c0_i32 = arith.constant 0 : i32
    %c0_i32_0 = arith.constant 0 : i32
    %c0_i32_1 = arith.constant 0 : i32
    return %arg0, %c0_i32, %c0_i32_0 : i32, i32, i32
  }
  func.func @transform_1(%arg0: i32) -> (i32, i32) {
    %c0_i32 = arith.constant 0 : i32
    %c0_i32_0 = arith.constant 0 : i32
    %c0_i32_1 = arith.constant 0 : i32
    return %c0_i32, %c0_i32_0 : i32, i32
  }
  func.func @transform_2(%arg0: i32) -> (i32, i32) {
    %c0_i32 = arith.constant 0 : i32
    %c0_i32_0 = arith.constant 0 : i32
    %c0_i32_1 = arith.constant 0 : i32
    return %c0_i32, %c0_i32_0 : i32, i32
  }
  func.func @transform_3(%arg0: i32) -> (i32, i32) {
    %c0_i32 = arith.constant 0 : i32
    %c0_i32_0 = arith.constant 0 : i32
    %c0_i32_1 = arith.constant 0 : i32
    return %c0_i32, %c0_i32_0 : i32, i32
  }
  func.func @transform_4(%arg0: i32) -> (i32, i32) {
    %c0_i32 = arith.constant 0 : i32
    %c0_i32_0 = arith.constant 0 : i32
    %c0_i32_1 = arith.constant 0 : i32
    return %c0_i32, %c0_i32_0 : i32, i32
  }
  func.func @transform_5(%arg0: i32) -> (i32, i32) {
    %c0_i32 = arith.constant 0 : i32
    %c0_i32_0 = arith.constant 0 : i32
    %c0_i32_1 = arith.constant 0 : i32
    return %c0_i32, %c0_i32_0 : i32, i32
  }
  func.func @transform_6(%arg0: i32) -> (i32, i32) {
    %c0_i32 = arith.constant 0 : i32
    %c0_i32_0 = arith.constant 0 : i32
    %c0_i32_1 = arith.constant 0 : i32
    return %c0_i32, %c0_i32_0 : i32, i32
  }
  func.func @transform_7(%arg0: i32) -> (i32, i32) {
    %c0_i32 = arith.constant 0 : i32
    %c0_i32_0 = arith.constant 0 : i32
    %c0_i32_1 = arith.constant 0 : i32
    return %c0_i32, %c0_i32_0 : i32, i32
  }
  func.func @transform_8(%arg0: i32) -> (i32, i32) {
    %c0_i32 = arith.constant 0 : i32
    %c0_i32_0 = arith.constant 0 : i32
    %c0_i32_1 = arith.constant 0 : i32
    return %c0_i32, %c0_i32_0 : i32, i32
  }
  func.func @transform_9(%arg0: i32) -> (i32, i32) {
    %c0_i32 = arith.constant 0 : i32
    %c0_i32_0 = arith.constant 0 : i32
    %c0_i32_1 = arith.constant 0 : i32
    return %c0_i32, %c0_i32_0 : i32, i32
  }
  func.func @transform_10(%arg0: i32) -> (i32, i32) {
    %c0_i32 = arith.constant 0 : i32
    %c0_i32_0 = arith.constant 0 : i32
    %c0_i32_1 = arith.constant 0 : i32
    return %c0_i32, %c0_i32_0 : i32, i32
  }
  func.func @transform_11(%arg0: i32) -> (i32, i32) {
    %c0_i32 = arith.constant 0 : i32
    %c0_i32_0 = arith.constant 0 : i32
    %c0_i32_1 = arith.constant 0 : i32
    return %c0_i32, %c0_i32_0 : i32, i32
  }
  func.func @transform_12(%arg0: i32) -> (i32, i32) {
    %c0_i32 = arith.constant 0 : i32
    %c0_i32_0 = arith.constant 0 : i32
    %c0_i32_1 = arith.constant 0 : i32
    return %c0_i32, %c0_i32_0 : i32, i32
  }
  func.func @transform_13(%arg0: i32) -> (i32, i32) {
    %c0_i32 = arith.constant 0 : i32
    %c0_i32_0 = arith.constant 0 : i32
    %c0_i32_1 = arith.constant 0 : i32
    return %c0_i32, %c0_i32_0 : i32, i32
  }
  func.func @transform_14(%arg0: i32) -> (i32, i32) {
    %c0_i32 = arith.constant 0 : i32
    %c0_i32_0 = arith.constant 0 : i32
    %c0_i32_1 = arith.constant 0 : i32
    return %c0_i32, %c0_i32_0 : i32, i32
  }
  func.func @transform_15(%arg0: i32) -> (i32, i32, i32) {
    %c0_i32 = arith.constant 0 : i32
    %c0_i32_0 = arith.constant 0 : i32
    %c0_i32_1 = arith.constant 0 : i32
    return %arg0, %c0_i32, %c0_i32_0 : i32, i32, i32
  }
}

</mosaic_0001>

<llo_original>
// kernel: tpu_custom_call.1
$region0: #{tpu_custom_call.1}
  #allocation0 [shape = 'u32[]', space=smem, size = 0x4, offset = 0x4, fixed_abs, tag = 'smem constant byte address 0x4 - core index']
  #allocation1 [shape = 'u32[144,128]{1,0:T(1,128)}', space=vmem, size = 0x12000, scoped, tag = 'internal scratch']
  %s0 = inlined_call_operand.vmem [shape: f32[2,8,32], index: 0, kind: input, shape index: {}]
  %s1 = inlined_call_operand.hbm [shape: f32[8,32], index: 1, kind: input, shape index: {}]
  %s2 = inlined_call_operand.hbm [shape: f32[8,8], index: 2, kind: input, shape index: {}]
  %s3 = inlined_call_operand.vmem [shape: bf16[32,96], index: 3, kind: input, shape index: {}]
  %s4 = inlined_call_operand.hbm [shape: f32[1,96], index: 4, kind: input, shape index: {}]
  %s5 = inlined_call_operand.vmem [shape: bf16[32,32], index: 5, kind: input, shape index: {}]
  %s6 = inlined_call_operand.hbm [shape: f32[1,32], index: 6, kind: input, shape index: {}]
  %s7 = inlined_call_operand.hbm [shape: f32[1,32], index: 7, kind: input, shape index: {}]
  %s8 = inlined_call_operand.hbm [shape: f32[1,32], index: 8, kind: input, shape index: {}]
  %s9 = inlined_call_operand.vmem [shape: bf16[32,64], index: 9, kind: input, shape index: {}]
  %s10 = inlined_call_operand.vmem [shape: f32[1,64], index: 10, kind: input, shape index: {}]
  %s11 = inlined_call_operand.vmem [shape: bf16[64,32], index: 11, kind: input, shape index: {}]
  %s12 = inlined_call_operand.vmem [shape: f32[1,32], index: 12, kind: input, shape index: {}]
  %s13 = inlined_call_operand.vmem [shape: f32[1,32], index: 13, kind: input, shape index: {}]
  %s14 = inlined_call_operand.vmem [shape: f32[1,32], index: 14, kind: input, shape index: {}]
  %s15 = inlined_call_operand.hbm [shape: bf16[2,8,32], index: 15, kind: output, shape index: {}]
  %s16 = sld [smem:[#allocation0]]
  $region117: #{tpu_custom_call.1} parent=0
    _
  %s18 = ssub.s32 1, %s16
  %s19 = scalar_select 0, %s18, %s16
  $region1: #{tpu_custom_call.1} parent=0
    #allocation2 [shape = 'u8[4096]{0}', space=vmem, size = 0x1000, scoped, tag = 'input window, operand 1, single buffered']
    #allocation3 [shape = 's32[2]{0}', space=sflag, size = 0x8, scoped, tag = 'scoped memory for tpu_custom_call.1']
    #allocation4 [shape = 's32[2]{0}', space=sflag, size = 0x8, scoped, tag = 'scoped memory for tpu_custom_call.1']
    #allocation5 [shape = 'u8[4096]{0}', space=vmem, size = 0x1000, scoped, tag = 'input window, operand 2, single buffered']
    #allocation6 [shape = 's32[1]{0}', space=sflag, size = 0x4, scoped, tag = 'scoped memory for tpu_custom_call.1']
    #allocation7 [shape = 'u8[512]{0}', space=vmem, size = 0x400, scoped, tag = 'input window, operand 4, single buffered']
    #allocation8 [shape = 'u8[512]{0}', space=vmem, size = 0x400, scoped, tag = 'input window, operand 6, single buffered']
    #allocation9 [shape = 's32[1]{0}', space=sflag, size = 0x4, scoped, tag = 'scoped memory for tpu_custom_call.1']
    #allocation10 [shape = 'u8[512]{0}', space=vmem, size = 0x400, scoped, tag = 'input window, operand 7, single buffered']
    #allocation11 [shape = 'u8[512]{0}', space=vmem, size = 0x400, scoped, tag = 'input window, operand 8, single buffered']
    #allocation12 [shape = 's32[1]{0}', space=sflag, size = 0x4, scoped, tag = 'scoped memory for tpu_custom_call.1']
    #allocation13 [shape = 'u8[4096]{0}', space=vmem, size = 0x1000, scoped, tag = 'output window, operand 0']
    %20 = vsyncpa [#allocation3], 0
    %21 = vsyncpa [#allocation6], 0
    %22 = vsyncpa [#allocation9], 0
    %23 = vsyncpa [#allocation12], 0
    %24 = vsyncpa [#allocation4], 0
    %s25 = scalar_lea.sflag [#allocation4], 1
    %26 = vsyncpa %s25, 0
    loop: start=0, step=1, limit=4
    $region2: #{tpu_custom_call.1} parent=1 // loop_pre_header
      _
    $region3: #{tpu_custom_call.1} parent=1 // loop_header
      %s28 = sphi 0, %s32
      %p29 = scmp.ge.s32.totalorder %s28, 4
      %s38 = sphi 0, %s40
      %s41 = sphi 0, %s38
      %s42 = sphi 0, %s41
      %s58 = sphi 0, %s42
      %s62 = sphi 0, %s62
      %s64 = sphi 0, %s62
      %s65 = sphi 0, %s64
      %s79 = sphi 0, %s65
      %s83 = sphi 0, %s83
      %s85 = sphi 0, %s83
      %s86 = sphi 0, %s85
      %s100 = sphi 0, %s86
      %s104 = sphi 0, %s104
      %s106 = sphi 0, %s104
      %s107 = sphi 0, %s106
      %s121 = sphi 0, %s107
      %s125 = sphi 0, %s125
      %s127 = sphi 0, %s125
      %s128 = sphi 0, %s127
      %s142 = sphi 0, %s128
      %s146 = sphi 0, %s146
      %s148 = sphi 0, %s146
      %s149 = sphi 0, %s148
      %s163 = sphi 0, %s149
      %s167 = sphi 0, %s167
      %s169 = sphi 0, %s167
      %s170 = sphi 0, %s169
      %s184 = sphi 0, %s170
      %s188 = sphi 0, %s188
      %s190 = sphi 0, %s188
      %s191 = sphi 0, %s190
      %s205 = sphi 0, %s191
      %s209 = sphi 0, %s209
      %s211 = sphi 0, %s209
      %s212 = sphi 0, %s211
      %s226 = sphi 0, %s212
      %s230 = sphi 0, %s230
      %s232 = sphi 0, %s230
      %s233 = sphi 0, %s232
      %s247 = sphi 0, %s233
      %s251 = sphi 0, %s251
      %s253 = sphi 0, %s251
      %s254 = sphi 0, %s253
      %s268 = sphi 0, %s254
      %s272 = sphi 0, %s272
      %s274 = sphi 0, %s272
      %s275 = sphi 0, %s274
      %s289 = sphi 0, %s275
      %s293 = sphi 0, %s293
      %s295 = sphi 0, %s293
      %s296 = sphi 0, %s295
      %s310 = sphi 0, %s296
      %s314 = sphi 0, %s314
      %s316 = sphi 0, %s314
      %s317 = sphi 0, %s316
      %s331 = sphi 0, %s317
      %s335 = sphi 0, %s335
      %s337 = sphi 0, %s335
      %s338 = sphi 0, %s337
      %s352 = sphi 0, %s338
      %s358 = sphi 0, %s360
      %s361 = sphi 0, %s358
      %s362 = sphi 0, %s361
      %s378 = sphi 0, %s362
    $region4: #{tpu_custom_call.1} parent=1 // loop_header_branch
      %31 = sbr.rel (%p29) target = $region8
    $region5: #{tpu_custom_call.1} parent=1 // loop_body
      %s33 = ssub.s32 %s28, 1
      %s34 = ssub.s32 %s28, 2
      %s35 = sadd.s32 %s28, 1
      %s36 = ssub.s32 %s28, %s35
      %p37 = scmp.eq.s32.totalorder %s36, 0
      %s39 = sadd.s32 %s38, 1
      %s40 = scalar_select %p37, %s38, %s39
      %p43 = pneg %p37
      %p44 = scmp.eq.s32.totalorder %s28, 1
      %p45 = por %p43, %p44
      %p46 = scmp.ne.s32.totalorder %s38, %s41
      %p47 = scmp.eq.s32.totalorder %s28, 0
      %p48 = por %p46, %p47
      %p49 = scmp.ne.s32.totalorder %s38, %s41
      %p50 = scmp.eq.s32.totalorder %s33, 1
      %p51 = por %p49, %p50
      %p52 = scmp.ne.s32.totalorder %s41, %s42
      %p53 = scmp.eq.s32.totalorder %s33, 0
      %p54 = por %p52, %p53
      %p55 = scmp.ne.s32.totalorder %s41, %s42
      %p56 = scmp.eq.s32.totalorder %s34, 1
      %p57 = por %p55, %p56
      %p59 = scmp.ne.s32.totalorder %s42, %s58
      %p60 = scmp.eq.s32.totalorder %s34, 0
      %p61 = por %p59, %p60
      %s63 = sadd.s32 %s62, 1
      %p66 = scmp.eq.s32.totalorder %s28, 1
      %p67 = scmp.ne.s32.totalorder %s62, %s64
      %p68 = scmp.eq.s32.totalorder %s28, 0
      %p69 = por %p67, %p68
      %p70 = scmp.ne.s32.totalorder %s62, %s64
      %p71 = scmp.eq.s32.totalorder %s33, 1
      %p72 = por %p70, %p71
      %p73 = scmp.ne.s32.totalorder %s64, %s65
      %p74 = scmp.eq.s32.totalorder %s33, 0
      %p75 = por %p73, %p74
      %p76 = scmp.ne.s32.totalorder %s64, %s65
      %p77 = scmp.eq.s32.totalorder %s34, 1
      %p78 = por %p76, %p77
      %p80 = scmp.ne.s32.totalorder %s65, %s79
      %p81 = scmp.eq.s32.totalorder %s34, 0
      %p82 = por %p80, %p81
      %s84 = sadd.s32 %s83, 1
      %p87 = scmp.eq.s32.totalorder %s28, 1
      %p88 = scmp.ne.s32.totalorder %s83, %s85
      %p89 = scmp.eq.s32.totalorder %s28, 0
      %p90 = por %p88, %p89
      %p91 = scmp.ne.s32.totalorder %s83, %s85
      %p92 = scmp.eq.s32.totalorder %s33, 1
      %p93 = por %p91, %p92
      %p94 = scmp.ne.s32.totalorder %s85, %s86
      %p95 = scmp.eq.s32.totalorder %s33, 0
      %p96 = por %p94, %p95
      %p97 = scmp.ne.s32.totalorder %s85, %s86
      %p98 = scmp.eq.s32.totalorder %s34, 1
      %p99 = por %p97, %p98
      %p101 = scmp.ne.s32.totalorder %s86, %s100
      %p102 = scmp.eq.s32.totalorder %s34, 0
      %p103 = por %p101, %p102
      %s105 = sadd.s32 %s104, 1
      %p108 = scmp.eq.s32.totalorder %s28, 1
      %p109 = scmp.ne.s32.totalorder %s104, %s106
      %p110 = scmp.eq.s32.totalorder %s28, 0
      %p111 = por %p109, %p110
      %p112 = scmp.ne.s32.totalorder %s104, %s106
      %p113 = scmp.eq.s32.totalorder %s33, 1
      %p114 = por %p112, %p113
      %p115 = scmp.ne.s32.totalorder %s106, %s107
      %p116 = scmp.eq.s32.totalorder %s33, 0
      %p117 = por %p115, %p116
      %p118 = scmp.ne.s32.totalorder %s106, %s107
      %p119 = scmp.eq.s32.totalorder %s34, 1
      %p120 = por %p118, %p119
      %p122 = scmp.ne.s32.totalorder %s107, %s121
      %p123 = scmp.eq.s32.totalorder %s34, 0
      %p124 = por %p122, %p123
      %s126 = sadd.s32 %s125, 1
      %p129 = scmp.eq.s32.totalorder %s28, 1
      %p130 = scmp.ne.s32.totalorder %s125, %s127
      %p131 = scmp.eq.s32.totalorder %s28, 0
      %p132 = por %p130, %p131
      %p133 = scmp.ne.s32.totalorder %s125, %s127
      %p134 = scmp.eq.s32.totalorder %s33, 1
      %p135 = por %p133, %p134
      %p136 = scmp.ne.s32.totalorder %s127, %s128
      %p137 = scmp.eq.s32.totalorder %s33, 0
      %p138 = por %p136, %p137
      %p139 = scmp.ne.s32.totalorder %s127, %s128
      %p140 = scmp.eq.s32.totalorder %s34, 1
      %p141 = por %p139, %p140
      %p143 = scmp.ne.s32.totalorder %s128, %s142
      %p144 = scmp.eq.s32.totalorder %s34, 0
      %p145 = por %p143, %p144
      %s147 = sadd.s32 %s146, 1
      %p150 = scmp.eq.s32.totalorder %s28, 1
      %p151 = scmp.ne.s32.totalorder %s146, %s148
      %p152 = scmp.eq.s32.totalorder %s28, 0
      %p153 = por %p151, %p152
      %p154 = scmp.ne.s32.totalorder %s146, %s148
      %p155 = scmp.eq.s32.totalorder %s33, 1
      %p156 = por %p154, %p155
      %p157 = scmp.ne.s32.totalorder %s148, %s149
      %p158 = scmp.eq.s32.totalorder %s33, 0
      %p159 = por %p157, %p158
      %p160 = scmp.ne.s32.totalorder %s148, %s149
      %p161 = scmp.eq.s32.totalorder %s34, 1
      %p162 = por %p160, %p161
      %p164 = scmp.ne.s32.totalorder %s149, %s163
      %p165 = scmp.eq.s32.totalorder %s34, 0
      %p166 = por %p164, %p165
      %s168 = sadd.s32 %s167, 1
      %p171 = scmp.eq.s32.totalorder %s28, 1
      %p172 = scmp.ne.s32.totalorder %s167, %s169
      %p173 = scmp.eq.s32.totalorder %s28, 0
      %p174 = por %p172, %p173
      %p175 = scmp.ne.s32.totalorder %s167, %s169
      %p176 = scmp.eq.s32.totalorder %s33, 1
      %p177 = por %p175, %p176
      %p178 = scmp.ne.s32.totalorder %s169, %s170
      %p179 = scmp.eq.s32.totalorder %s33, 0
      %p180 = por %p178, %p179
      %p181 = scmp.ne.s32.totalorder %s169, %s170
      %p182 = scmp.eq.s32.totalorder %s34, 1
      %p183 = por %p181, %p182
      %p185 = scmp.ne.s32.totalorder %s170, %s184
      %p186 = scmp.eq.s32.totalorder %s34, 0
      %p187 = por %p185, %p186
      %s189 = sadd.s32 %s188, 1
      %p192 = scmp.eq.s32.totalorder %s28, 1
      %p193 = scmp.ne.s32.totalorder %s188, %s190
      %p194 = scmp.eq.s32.totalorder %s28, 0
      %p195 = por %p193, %p194
      %p196 = scmp.ne.s32.totalorder %s188, %s190
      %p197 = scmp.eq.s32.totalorder %s33, 1
      %p198 = por %p196, %p197
      %p199 = scmp.ne.s32.totalorder %s190, %s191
      %p200 = scmp.eq.s32.totalorder %s33, 0
      %p201 = por %p199, %p200
      %p202 = scmp.ne.s32.totalorder %s190, %s191
      %p203 = scmp.eq.s32.totalorder %s34, 1
      %p204 = por %p202, %p203
      %p206 = scmp.ne.s32.totalorder %s191, %s205
      %p207 = scmp.eq.s32.totalorder %s34, 0
      %p208 = por %p206, %p207
      %s210 = sadd.s32 %s209, 1
      %p213 = scmp.eq.s32.totalorder %s28, 1
      %p214 = scmp.ne.s32.totalorder %s209, %s211
      %p215 = scmp.eq.s32.totalorder %s28, 0
      %p216 = por %p214, %p215
      %p217 = scmp.ne.s32.totalorder %s209, %s211
      %p218 = scmp.eq.s32.totalorder %s33, 1
      %p219 = por %p217, %p218
      %p220 = scmp.ne.s32.totalorder %s211, %s212
      %p221 = scmp.eq.s32.totalorder %s33, 0
      %p222 = por %p220, %p221
      %p223 = scmp.ne.s32.totalorder %s211, %s212
      %p224 = scmp.eq.s32.totalorder %s34, 1
      %p225 = por %p223, %p224
      %p227 = scmp.ne.s32.totalorder %s212, %s226
      %p228 = scmp.eq.s32.totalorder %s34, 0
      %p229 = por %p227, %p228
      %s231 = sadd.s32 %s230, 1
      %p234 = scmp.eq.s32.totalorder %s28, 1
      %p235 = scmp.ne.s32.totalorder %s230, %s232
      %p236 = scmp.eq.s32.totalorder %s28, 0
      %p237 = por %p235, %p236
      %p238 = scmp.ne.s32.totalorder %s230, %s232
      %p239 = scmp.eq.s32.totalorder %s33, 1
      %p240 = por %p238, %p239
      %p241 = scmp.ne.s32.totalorder %s232, %s233
      %p242 = scmp.eq.s32.totalorder %s33, 0
      %p243 = por %p241, %p242
      %p244 = scmp.ne.s32.totalorder %s232, %s233
      %p245 = scmp.eq.s32.totalorder %s34, 1
      %p246 = por %p244, %p245
      %p248 = scmp.ne.s32.totalorder %s233, %s247
      %p249 = scmp.eq.s32.totalorder %s34, 0
      %p250 = por %p248, %p249
      %s252 = sadd.s32 %s251, 1
      %p255 = scmp.eq.s32.totalorder %s28, 1
      %p256 = scmp.ne.s32.totalorder %s251, %s253
      %p257 = scmp.eq.s32.totalorder %s28, 0
      %p258 = por %p256, %p257
      %p259 = scmp.ne.s32.totalorder %s251, %s253
      %p260 = scmp.eq.s32.totalorder %s33, 1
      %p261 = por %p259, %p260
      %p262 = scmp.ne.s32.totalorder %s253, %s254
      %p263 = scmp.eq.s32.totalorder %s33, 0
      %p264 = por %p262, %p263
      %p265 = scmp.ne.s32.totalorder %s253, %s254
      %p266 = scmp.eq.s32.totalorder %s34, 1
      %p267 = por %p265, %p266
      %p269 = scmp.ne.s32.totalorder %s254, %s268
      %p270 = scmp.eq.s32.totalorder %s34, 0
      %p271 = por %p269, %p270
      %s273 = sadd.s32 %s272, 1
      %p276 = scmp.eq.s32.totalorder %s28, 1
      %p277 = scmp.ne.s32.totalorder %s272, %s274
      %p278 = scmp.eq.s32.totalorder %s28, 0
      %p279 = por %p277, %p278
      %p280 = scmp.ne.s32.totalorder %s272, %s274
      %p281 = scmp.eq.s32.totalorder %s33, 1
      %p282 = por %p280, %p281
      %p283 = scmp.ne.s32.totalorder %s274, %s275
      %p284 = scmp.eq.s32.totalorder %s33, 0
      %p285 = por %p283, %p284
      %p286 = scmp.ne.s32.totalorder %s274, %s275
      %p287 = scmp.eq.s32.totalorder %s34, 1
      %p288 = por %p286, %p287
      %p290 = scmp.ne.s32.totalorder %s275, %s289
      %p291 = scmp.eq.s32.totalorder %s34, 0
      %p292 = por %p290, %p291
      %s294 = sadd.s32 %s293, 1
      %p297 = scmp.eq.s32.totalorder %s28, 1
      %p298 = scmp.ne.s32.totalorder %s293, %s295
      %p299 = scmp.eq.s32.totalorder %s28, 0
      %p300 = por %p298, %p299
      %p301 = scmp.ne.s32.totalorder %s293, %s295
      %p302 = scmp.eq.s32.totalorder %s33, 1
      %p303 = por %p301, %p302
      %p304 = scmp.ne.s32.totalorder %s295, %s296
      %p305 = scmp.eq.s32.totalorder %s33, 0
      %p306 = por %p304, %p305
      %p307 = scmp.ne.s32.totalorder %s295, %s296
      %p308 = scmp.eq.s32.totalorder %s34, 1
      %p309 = por %p307, %p308
      %p311 = scmp.ne.s32.totalorder %s296, %s310
      %p312 = scmp.eq.s32.totalorder %s34, 0
      %p313 = por %p311, %p312
      %s315 = sadd.s32 %s314, 1
      %p318 = scmp.eq.s32.totalorder %s28, 1
      %p319 = scmp.ne.s32.totalorder %s314, %s316
      %p320 = scmp.eq.s32.totalorder %s28, 0
      %p321 = por %p319, %p320
      %p322 = scmp.ne.s32.totalorder %s314, %s316
      %p323 = scmp.eq.s32.totalorder %s33, 1
      %p324 = por %p322, %p323
      %p325 = scmp.ne.s32.totalorder %s316, %s317
      %p326 = scmp.eq.s32.totalorder %s33, 0
      %p327 = por %p325, %p326
      %p328 = scmp.ne.s32.totalorder %s316, %s317
      %p329 = scmp.eq.s32.totalorder %s34, 1
      %p330 = por %p328, %p329
      %p332 = scmp.ne.s32.totalorder %s317, %s331
      %p333 = scmp.eq.s32.totalorder %s34, 0
      %p334 = por %p332, %p333
      %s336 = sadd.s32 %s335, 1
      %p339 = scmp.eq.s32.totalorder %s28, 1
      %p340 = scmp.ne.s32.totalorder %s335, %s337
      %p341 = scmp.eq.s32.totalorder %s28, 0
      %p342 = por %p340, %p341
      %p343 = scmp.ne.s32.totalorder %s335, %s337
      %p344 = scmp.eq.s32.totalorder %s33, 1
      %p345 = por %p343, %p344
      %p346 = scmp.ne.s32.totalorder %s337, %s338
      %p347 = scmp.eq.s32.totalorder %s33, 0
      %p348 = por %p346, %p347
      %p349 = scmp.ne.s32.totalorder %s337, %s338
      %p350 = scmp.eq.s32.totalorder %s34, 1
      %p351 = por %p349, %p350
      %p353 = scmp.ne.s32.totalorder %s338, %s352
      %p354 = scmp.eq.s32.totalorder %s34, 0
      %p355 = por %p353, %p354
      %s356 = ssub.s32 %s28, %s35
      %p357 = scmp.eq.s32.totalorder %s356, 0
      %s359 = sadd.s32 %s358, 1
      %s360 = scalar_select %p357, %s358, %s359
      %p363 = pneg %p357
      %p364 = scmp.eq.s32.totalorder %s28, 1
      %p365 = por %p363, %p364
      %p366 = scmp.ne.s32.totalorder %s358, %s361
      %p367 = scmp.eq.s32.totalorder %s28, 0
      %p368 = por %p366, %p367
      %p369 = scmp.ne.s32.totalorder %s358, %s361
      %p370 = scmp.eq.s32.totalorder %s33, 1
      %p371 = por %p369, %p370
      %p372 = scmp.ne.s32.totalorder %s361, %s362
      %p373 = scmp.eq.s32.totalorder %s33, 0
      %p374 = por %p372, %p373
      %p375 = scmp.ne.s32.totalorder %s361, %s362
      %p376 = scmp.eq.s32.totalorder %s34, 1
      %p377 = por %p375, %p376
      %p379 = scmp.ne.s32.totalorder %s362, %s378
      %p380 = scmp.eq.s32.totalorder %s34, 0
      %p381 = por %p379, %p380
      %p382 = scmp.le.s32.totalorder 1, %s28
      %p383 = scmp.lt.s32.totalorder %s28, 3
      %p384 = pnand %p382, %p383
      %p385 = pneg %p384
      // Predicated region
      $region9: #{tpu_custom_call.1} parent=5 // pred_check
        _
      $region10: #{tpu_custom_call.1} parent=5 // pred_check_branch
        %387 = sbr.rel (%p384) target = $region12
      $region11: #{tpu_custom_call.1} parent=5 // pred_region
        %s388 = ssub.s32 %s28, 1
        // Predicated region
        $region13: #{tpu_custom_call.1} parent=11 // pred_check
          %p389 = pneg %p75
        $region14: #{tpu_custom_call.1} parent=11 // pred_check_branch
          %391 = sbr.rel (%p389) target = $region16
        $region15: #{tpu_custom_call.1} parent=11 // pred_region
          %s393 = ssub.s32 128, 128
          %394 = vsyncadd [#allocation3], %s393
          %s396 = sshll.u32 [#allocation2], 4
          %s397 = int_to_ptr.vmem [resolvable:$true] %s396
          %399 = dma.hbm_to_vmem [thread:$0]  %s1, 128, %s397, [#allocation3]
        $region16: #{tpu_custom_call.1} parent=11 // pred_fallthru
          _
        // Predicated region
        $region17: #{tpu_custom_call.1} parent=11 // pred_check
          %p400 = pneg %p96
        $region18: #{tpu_custom_call.1} parent=11 // pred_check_branch
          %402 = sbr.rel (%p400) target = $region20
        $region19: #{tpu_custom_call.1} parent=11 // pred_region
          %s404 = ssub.s32 128, 128
          %405 = vsyncadd [#allocation6], %s404
          %s407 = sshll.u32 [#allocation5], 4
          %s408 = int_to_ptr.vmem [resolvable:$true] %s407
          %410 = dma.hbm_to_vmem [thread:$0]  %s2, 128, %s408, [#allocation6]
        $region20: #{tpu_custom_call.1} parent=11 // pred_fallthru
          _
        // Predicated region
        $region21: #{tpu_custom_call.1} parent=11 // pred_check
          %p411 = pneg %p117
        $region22: #{tpu_custom_call.1} parent=11 // pred_check_branch
          %413 = sbr.rel (%p411) target = $region24
        $region23: #{tpu_custom_call.1} parent=11 // pred_region
          _
        $region24: #{tpu_custom_call.1} parent=11 // pred_fallthru
          _
        // Predicated region
        $region25: #{tpu_custom_call.1} parent=11 // pred_check
          %p414 = pneg %p138
        $region26: #{tpu_custom_call.1} parent=11 // pred_check_branch
          %416 = sbr.rel (%p414) target = $region28
        $region27: #{tpu_custom_call.1} parent=11 // pred_region
          %s418 = ssub.s32 16, 16
          %419 = vsyncadd [#allocation6], %s418
          %s421 = sshll.u32 [#allocation7], 4
          %s422 = int_to_ptr.vmem [resolvable:$true] %s421
          %424 = dma.hbm_to_vmem [thread:$0]  %s4, 16, %s422, [#allocation6]
        $region28: #{tpu_custom_call.1} parent=11 // pred_fallthru
          _
        // Predicated region
        $region29: #{tpu_custom_call.1} parent=11 // pred_check
          %p425 = pneg %p159
        $region30: #{tpu_custom_call.1} parent=11 // pred_check_branch
          %427 = sbr.rel (%p425) target = $region32
        $region31: #{tpu_custom_call.1} parent=11 // pred_region
          _
        $region32: #{tpu_custom_call.1} parent=11 // pred_fallthru
          _
        // Predicated region
        $region33: #{tpu_custom_call.1} parent=11 // pred_check
          %p428 = pneg %p180
        $region34: #{tpu_custom_call.1} parent=11 // pred_check_branch
          %430 = sbr.rel (%p428) target = $region36
        $region35: #{tpu_custom_call.1} parent=11 // pred_region
          %s432 = ssub.s32 16, 16
          %433 = vsyncadd [#allocation9], %s432
          %s435 = sshll.u32 [#allocation8], 4
          %s436 = int_to_ptr.vmem [resolvable:$true] %s435
          %438 = dma.hbm_to_vmem [thread:$0]  %s6, 16, %s436, [#allocation9]
        $region36: #{tpu_custom_call.1} parent=11 // pred_fallthru
          _
        // Predicated region
        $region37: #{tpu_custom_call.1} parent=11 // pred_check
          %p439 = pneg %p201
        $region38: #{tpu_custom_call.1} parent=11 // pred_check_branch
          %441 = sbr.rel (%p439) target = $region40
        $region39: #{tpu_custom_call.1} parent=11 // pred_region
          %s443 = ssub.s32 16, 16
          %444 = vsyncadd [#allocation9], %s443
          %s446 = sshll.u32 [#allocation10], 4
          %s447 = int_to_ptr.vmem [resolvable:$true] %s446
          %449 = dma.hbm_to_vmem [thread:$0]  %s7, 16, %s447, [#allocation9]
        $region40: #{tpu_custom_call.1} parent=11 // pred_fallthru
          _
        // Predicated region
        $region41: #{tpu_custom_call.1} parent=11 // pred_check
          %p450 = pneg %p222
        $region42: #{tpu_custom_call.1} parent=11 // pred_check_branch
          %452 = sbr.rel (%p450) target = $region44
        $region43: #{tpu_custom_call.1} parent=11 // pred_region
          %s454 = ssub.s32 16, 16
          %455 = vsyncadd [#allocation12], %s454
          %s457 = sshll.u32 [#allocation11], 4
          %s458 = int_to_ptr.vmem [resolvable:$true] %s457
          %460 = dma.hbm_to_vmem [thread:$0]  %s8, 16, %s458, [#allocation12]
        $region44: #{tpu_custom_call.1} parent=11 // pred_fallthru
          _
        // Predicated region
        $region45: #{tpu_custom_call.1} parent=11 // pred_check
          %p461 = pneg %p243
        $region46: #{tpu_custom_call.1} parent=11 // pred_check_branch
          %463 = sbr.rel (%p461) target = $region48
        $region47: #{tpu_custom_call.1} parent=11 // pred_region
          _
        $region48: #{tpu_custom_call.1} parent=11 // pred_fallthru
          _
        // Predicated region
        $region49: #{tpu_custom_call.1} parent=11 // pred_check
          %p464 = pneg %p264
        $region50: #{tpu_custom_call.1} parent=11 // pred_check_branch
          %466 = sbr.rel (%p464) target = $region52
        $region51: #{tpu_custom_call.1} parent=11 // pred_region
          _
        $region52: #{tpu_custom_call.1} parent=11 // pred_fallthru
          _
        // Predicated region
        $region53: #{tpu_custom_call.1} parent=11 // pred_check
          %p467 = pneg %p285
        $region54: #{tpu_custom_call.1} parent=11 // pred_check_branch
          %469 = sbr.rel (%p467) target = $region56
        $region55: #{tpu_custom_call.1} parent=11 // pred_region
          _
        $region56: #{tpu_custom_call.1} parent=11 // pred_fallthru
          _
        // Predicated region
        $region57: #{tpu_custom_call.1} parent=11 // pred_check
          %p470 = pneg %p306
        $region58: #{tpu_custom_call.1} parent=11 // pred_check_branch
          %472 = sbr.rel (%p470) target = $region60
        $region59: #{tpu_custom_call.1} parent=11 // pred_region
          _
        $region60: #{tpu_custom_call.1} parent=11 // pred_fallthru
          _
        // Predicated region
        $region61: #{tpu_custom_call.1} parent=11 // pred_check
          %p473 = pneg %p327
        $region62: #{tpu_custom_call.1} parent=11 // pred_check_branch
          %475 = sbr.rel (%p473) target = $region64
        $region63: #{tpu_custom_call.1} parent=11 // pred_region
          _
        $region64: #{tpu_custom_call.1} parent=11 // pred_fallthru
          _
        // Predicated region
        $region65: #{tpu_custom_call.1} parent=11 // pred_check
          %p476 = pneg %p348
        $region66: #{tpu_custom_call.1} parent=11 // pred_check_branch
          %478 = sbr.rel (%p476) target = $region68
        $region67: #{tpu_custom_call.1} parent=11 // pred_region
          _
        $region68: #{tpu_custom_call.1} parent=11 // pred_fallthru
          _
      $region12: #{tpu_custom_call.1} parent=5 // pred_fallthru
        _
      %p479 = scmp.lt.s32.totalorder %s28, 2
      // Predicated region
      $region69: #{tpu_custom_call.1} parent=5 // pred_check
        %p480 = pneg %p479
      $region70: #{tpu_custom_call.1} parent=5 // pred_check_branch
        %482 = sbr.rel (%p480) target = $region72
      $region71: #{tpu_custom_call.1} parent=5 // pred_region
        // Predicated region
        $region73: #{tpu_custom_call.1} parent=71 // pred_check
          %p483 = pneg %p48
        $region74: #{tpu_custom_call.1} parent=71 // pred_check_branch
          %485 = sbr.rel (%p483) target = $region76
        $region75: #{tpu_custom_call.1} parent=71 // pred_region
          %p486 = scmp.lt.s32.totalorder %s28, 1
          %s487 = scalar_select %p486, %s28, 1
          %s488 = smul.addr %s487, 8
          %s489 = scalar_lea.vmem %s0, %s488
        $region76: #{tpu_custom_call.1} parent=71 // pred_fallthru
          _
      $region72: #{tpu_custom_call.1} parent=5 // pred_fallthru
        _
      %p490 = scmp.le.s32.totalorder 1, %s28
      %p491 = scmp.lt.s32.totalorder %s28, 3
      %p492 = pnand %p490, %p491
      %p493 = pneg %p492
      // Predicated region
      $region77: #{tpu_custom_call.1} parent=5 // pred_check
        _
      $region78: #{tpu_custom_call.1} parent=5 // pred_check_branch
        %495 = sbr.rel (%p492) target = $region80
      $region79: #{tpu_custom_call.1} parent=5 // pred_region
        %s496 = ssub.s32 %s28, 1
        // Predicated region
        $region81: #{tpu_custom_call.1} parent=79 // pred_check
          %p497 = pneg %p75
        $region82: #{tpu_custom_call.1} parent=79 // pred_check_branch
          %499 = sbr.rel (%p497) target = $region84
        $region83: #{tpu_custom_call.1} parent=79 // pred_region
          %500 = dma.done [#allocation3], 128
        $region84: #{tpu_custom_call.1} parent=79 // pred_fallthru
          _
        // Predicated region
        $region85: #{tpu_custom_call.1} parent=79 // pred_check
          %p501 = pneg %p96
        $region86: #{tpu_custom_call.1} parent=79 // pred_check_branch
          %503 = sbr.rel (%p501) target = $region88
        $region87: #{tpu_custom_call.1} parent=79 // pred_region
          %504 = dma.done [#allocation6], 128
        $region88: #{tpu_custom_call.1} parent=79 // pred_fallthru
          _
        // Predicated region
        $region89: #{tpu_custom_call.1} parent=79 // pred_check
          %p505 = pneg %p138
        $region90: #{tpu_custom_call.1} parent=79 // pred_check_branch
          %507 = sbr.rel (%p505) target = $region92
        $region91: #{tpu_custom_call.1} parent=79 // pred_region
          %508 = dma.done [#allocation6], 16
        $region92: #{tpu_custom_call.1} parent=79 // pred_fallthru
          _
        // Predicated region
        $region93: #{tpu_custom_call.1} parent=79 // pred_check
          %p509 = pneg %p180
        $region94: #{tpu_custom_call.1} parent=79 // pred_check_branch
          %511 = sbr.rel (%p509) target = $region96
        $region95: #{tpu_custom_call.1} parent=79 // pred_region
          %512 = dma.done [#allocation9], 16
        $region96: #{tpu_custom_call.1} parent=79 // pred_fallthru
          _
        // Predicated region
        $region97: #{tpu_custom_call.1} parent=79 // pred_check
          %p513 = pneg %p201
        $region98: #{tpu_custom_call.1} parent=79 // pred_check_branch
          %515 = sbr.rel (%p513) target = $region100
        $region99: #{tpu_custom_call.1} parent=79 // pred_region
          %516 = dma.done [#allocation9], 16
        $region100: #{tpu_custom_call.1} parent=79 // pred_fallthru
          _
        // Predicated region
        $region101: #{tpu_custom_call.1} parent=79 // pred_check
          %p517 = pneg %p222
        $region102: #{tpu_custom_call.1} parent=79 // pred_check_branch
          %519 = sbr.rel (%p517) target = $region104
        $region103: #{tpu_custom_call.1} parent=79 // pred_region
          %520 = dma.done [#allocation12], 16
        $region104: #{tpu_custom_call.1} parent=79 // pred_fallthru
          _
        %p521 = scmp.lt.s32.totalorder %s33, 1
        %s522 = scalar_select %p521, %s33, 1
        %s523 = smul.addr %s522, 8
        %s524 = scalar_lea.vmem %s0, %s523
        %p525 = pneg %p54
        %p526 = pneg %p51
        %p527 = pneg %p75
        %p528 = pneg %p72
        %p529 = pneg %p96
        %p530 = pneg %p93
        %p531 = pneg %p117
        %p532 = pneg %p114
        %p533 = pneg %p138
        %p534 = pneg %p135
        %p535 = pneg %p159
        %p536 = pneg %p156
        %p537 = pneg %p180
        %p538 = pneg %p177
        %p539 = pneg %p201
        %p540 = pneg %p198
        %p541 = pneg %p222
        %p542 = pneg %p219
        %p543 = pneg %p243
        %p544 = pneg %p240
        %p545 = pneg %p264
        %p546 = pneg %p261
        %p547 = pneg %p285
        %p548 = pneg %p282
        %p549 = pneg %p306
        %p550 = pneg %p303
        %p551 = pneg %p327
        %p552 = pneg %p324
        %p553 = pneg %p348
        %p554 = pneg %p345
        %p555 = pneg %p374
        %p556 = pneg %p371
        %s557 = sand.u32 %s361, 1
        %s558 = scalar_lea.sflag [#allocation4], %s557
        %s559 = sand.u32 %s361, 1
        %s560 = smul.addr %s559, 4
        %s561 = scalar_lea.vmem [#allocation13], %s560
        %p562 = scmp.lt.s32.totalorder %s33, 1
        %s563 = scalar_select %p562, %s33, 1
        %s564 = smul.addr %s563, 8
        %s565 = scalar_lea.vmem %s0, %s564
        %v567 = vld [vmem:[%s565] sm:$0xff]
        %v568 = vmul.f32 %v567, 5.656854
        %v569 = vld [vmem:[#allocation2] sm:$0xff]
        %v570 = vadd.f32 %v568, %v569
        %v571 = vpack.c.bf16 %v570, %v570
        %v572 = vld [vmem:[%s3] sm:$0xf]
        %v573 = vld [vmem:[%s3 + $0x4] sm:$0xf]
        %v574 = vld [vmem:[%s3 + $0x8] sm:$0xf]
        %v575 = vld [vmem:[%s3 + $0xc] sm:$0xf]
        %v576 = vld [vmem:[#allocation7] sm:$0x1]
        %v578 = vlaneseq
        %v579 = vshrl.u32 %v578, 7
        %v580 = vsub.s32 0, %v579
        %v581 = vrot.slane %v576, %v580
        %v587 = vunpack.c.l.b16 %v572
        %v588 = vunpack.c.l.b16 %v573
        %v589 = vunpack.c.l.b16 %v574
        %v590 = vunpack.c.l.b16 %v575
        %v591 = vpack.c.b16 %v588, %v587
        %v592 = vpack.c.b16 %v590, %v589
        %vm595 = vcmask 261120
        %v597 = vsel %vm595, %v571, 0
        %599 = vmatprep.subr.bf16.mxu0 0
        %600 = vmatpush1.bf16.msra.mxu0 0
        %601 = vmatprep.subr.bf16.mxu0 0
        %602 = vmatpush1.bf16.msra.mxu0 0
        %603 = vmatprep.subr.bf16.mxu0 0
        %604 = vmatpush1.bf16.msra.mxu0 0
        %605 = vmatprep.subr.bf16.mxu0 0
        %606 = vmatpush1.bf16.msra.mxu0 0
        %607 = vmatprep.subr.bf16.mxu0 0
        %608 = vmatpush1.bf16.msra.mxu0 0
        %609 = vmatprep.subr.bf16.mxu0 0
        %610 = vmatpush1.bf16.msra.mxu0 0
        %611 = vmatprep.subr.bf16.mxu0 0
        %612 = vmatpush1.bf16.msra.mxu0 %v592
        %613 = vmatprep.subr.bf16.mxu0 0
        %614 = vmatpush1.bf16.msra.mxu0 %v591
        %615 = vmatprep.subr.bf16.mxu0 0
        %616 = vmatpush2.bf16.msra.mxu0 0
        %617 = vmatprep.subr.bf16.mxu0 0
        %618 = vmatpush2.bf16.msra.mxu0 0
        %619 = vmatprep.subr.bf16.mxu0 0
        %620 = vmatpush2.bf16.msra.mxu0 0
        %621 = vmatprep.subr.bf16.mxu0 0
        %622 = vmatpush2.bf16.msra.mxu0 0
        %623 = vmatprep.subr.bf16.mxu0 0
        %624 = vmatpush2.bf16.msra.mxu0 0
        %625 = vmatprep.subr.bf16.mxu0 0
        %626 = vmatpush2.bf16.msra.mxu0 0
        %627 = vmatprep.subr.bf16.mxu0 0
        %628 = vmatpush2.bf16.msra.mxu0 0
        %629 = vmatprep.subr.bf16.mxu0 0
        %630 = vmatpush2.bf16.msra.mxu0 0
        %631 = vmatprep.mubr.bf16.mxu0 0
        %632 = vmatmul.mubr.bf16.gmra.mxu0 %v597
        %v633 = vpop.f32.mrf.mxu0
        %v634 = vadd.f32 %v581, %v633
        %v635 = vpop.f32.mrf.mxu0
        %v636 = vpop.f32.mrf.mxu0
        %v637 = vpop.f32.mrf.mxu0
        %638 = vdwg.mxu0
        %640 = vrot.lane.b32.xlu0 %v634, 120
        %v641 = vpop.permute.xlu0 %640
        %643 = vrot.lane.b32.xlu0 %v634, 112
        %v644 = vpop.permute.xlu0 %643
        %646 = vrot.lane.b32.xlu0 %v634, 104
        %v647 = vpop.permute.xlu0 %646
        %v649 = vpack.c.bf16 %v634, %v634
        %v650 = vpack.c.bf16 %v641, %v641
        %v651 = vpack.c.bf16 %v644, %v644
        %v652 = vpack.c.bf16 %v647, %v647
        %654 = vrot.lane.b32.xlu0 %v649, 96
        %v655 = vpop.permute.xlu0 %654
        %vm656 = vcmask 64512
        %v658 = vsel %vm656, %v649, 0
        %v661 = vsel %vm656, %v655, 0
        %663 = vmatprep.subr.bf16.mxu0 0
        %664 = vmatpush1.bf16.xpose.msra.mxu0 0
        %665 = vmatprep.subr.bf16.mxu0 0
        %666 = vmatpush1.bf16.xpose.msra.mxu0 0
        %667 = vmatprep.subr.bf16.mxu0 0
        %668 = vmatpush1.bf16.xpose.msra.mxu0 0
        %669 = vmatprep.subr.bf16.mxu0 0
        %670 = vmatpush1.bf16.xpose.msra.mxu0 0
        %671 = vmatprep.subr.bf16.mxu0 0
        %672 = vmatpush1.bf16.xpose.msra.mxu0 0
        %673 = vmatprep.subr.bf16.mxu0 0
        %674 = vmatpush1.bf16.xpose.msra.mxu0 0
        %675 = vmatprep.subr.bf16.mxu0 0
        %676 = vmatpush1.bf16.xpose.msra.mxu0 0
        %677 = vmatprep.subr.bf16.mxu0 0
        %678 = vmatpush1.bf16.xpose.msra.mxu0 %v661
        %679 = vmatprep.subr.bf16.mxu0 0
        %680 = vmatpush2.bf16.xpose.msra.mxu0 0
        %681 = vmatprep.subr.bf16.mxu0 0
        %682 = vmatpush2.bf16.xpose.msra.mxu0 0
        %683 = vmatprep.subr.bf16.mxu0 0
        %684 = vmatpush2.bf16.xpose.msra.mxu0 0
        %685 = vmatprep.subr.bf16.mxu0 0
        %686 = vmatpush2.bf16.xpose.msra.mxu0 0
        %687 = vmatprep.subr.bf16.mxu0 0
        %688 = vmatpush2.bf16.xpose.msra.mxu0 0
        %689 = vmatprep.subr.bf16.mxu0 0
        %690 = vmatpush2.bf16.xpose.msra.mxu0 0
        %691 = vmatprep.subr.bf16.mxu0 0
        %692 = vmatpush2.bf16.xpose.msra.mxu0 0
        %693 = vmatprep.subr.bf16.mxu0 0
        %694 = vmatpush2.bf16.xpose.msra.mxu0 0
        %695 = vmatprep.mubr.bf16.mxu0 0
        %696 = vmatmul.mubr.bf16.gmra.mxu0 %v658
        %v697 = vpop.f32.mrf.mxu0
        %v698 = vadd.f32 0.0, %v697
        %v699 = vpop.f32.mrf.mxu0
        %v700 = vpop.f32.mrf.mxu0
        %v701 = vpop.f32.mrf.mxu0
        %702 = vdwg.mxu0
        %704 = vrot.lane.b32.xlu0 %v650, 96
        %v705 = vpop.permute.xlu0 %704
        %v707 = vsel %vm656, %v650, 0
        %v710 = vsel %vm656, %v705, 0
        %712 = vmatprep.subr.bf16.mxu0 0
        %713 = vmatpush1.bf16.xpose.msra.mxu0 0
        %714 = vmatprep.subr.bf16.mxu0 0
        %715 = vmatpush1.bf16.xpose.msra.mxu0 0
        %716 = vmatprep.subr.bf16.mxu0 0
        %717 = vmatpush1.bf16.xpose.msra.mxu0 0
        %718 = vmatprep.subr.bf16.mxu0 0
        %719 = vmatpush1.bf16.xpose.msra.mxu0 0
        %720 = vmatprep.subr.bf16.mxu0 0
        %721 = vmatpush1.bf16.xpose.msra.mxu0 0
        %722 = vmatprep.subr.bf16.mxu0 0
        %723 = vmatpush1.bf16.xpose.msra.mxu0 0
        %724 = vmatprep.subr.bf16.mxu0 0
        %725 = vmatpush1.bf16.xpose.msra.mxu0 0
        %726 = vmatprep.subr.bf16.mxu0 0
        %727 = vmatpush1.bf16.xpose.msra.mxu0 %v710
        %728 = vmatprep.subr.bf16.mxu0 0
        %729 = vmatpush2.bf16.xpose.msra.mxu0 0
        %730 = vmatprep.subr.bf16.mxu0 0
        %731 = vmatpush2.bf16.xpose.msra.mxu0 0
        %732 = vmatprep.subr.bf16.mxu0 0
        %733 = vmatpush2.bf16.xpose.msra.mxu0 0
        %734 = vmatprep.subr.bf16.mxu0 0
        %735 = vmatpush2.bf16.xpose.msra.mxu0 0
        %736 = vmatprep.subr.bf16.mxu0 0
        %737 = vmatpush2.bf16.xpose.msra.mxu0 0
        %738 = vmatprep.subr.bf16.mxu0 0
        %739 = vmatpush2.bf16.xpose.msra.mxu0 0
        %740 = vmatprep.subr.bf16.mxu0 0
        %741 = vmatpush2.bf16.xpose.msra.mxu0 0
        %742 = vmatprep.subr.bf16.mxu0 0
        %743 = vmatpush2.bf16.xpose.msra.mxu0 0
        %744 = vmatprep.mubr.bf16.mxu0 0
        %745 = vmatmul.mubr.bf16.gmra.mxu0 %v707
        %v746 = vpop.f32.mrf.mxu0
        %v747 = vadd.f32 0.0, %v746
        %v748 = vpop.f32.mrf.mxu0
        %v749 = vpop.f32.mrf.mxu0
        %v750 = vpop.f32.mrf.mxu0
        %751 = vdwg.mxu0
        %753 = vrot.lane.b32.xlu0 %v651, 96
        %v754 = vpop.permute.xlu0 %753
        %v756 = vsel %vm656, %v651, 0
        %v759 = vsel %vm656, %v754, 0
        %761 = vmatprep.subr.bf16.mxu0 0
        %762 = vmatpush1.bf16.xpose.msra.mxu0 0
        %763 = vmatprep.subr.bf16.mxu0 0
        %764 = vmatpush1.bf16.xpose.msra.mxu0 0
        %765 = vmatprep.subr.bf16.mxu0 0
        %766 = vmatpush1.bf16.xpose.msra.mxu0 0
        %767 = vmatprep.subr.bf16.mxu0 0
        %768 = vmatpush1.bf16.xpose.msra.mxu0 0
        %769 = vmatprep.subr.bf16.mxu0 0
        %770 = vmatpush1.bf16.xpose.msra.mxu0 0
        %771 = vmatprep.subr.bf16.mxu0 0
        %772 = vmatpush1.bf16.xpose.msra.mxu0 0
        %773 = vmatprep.subr.bf16.mxu0 0
        %774 = vmatpush1.bf16.xpose.msra.mxu0 0
        %775 = vmatprep.subr.bf16.mxu0 0
        %776 = vmatpush1.bf16.xpose.msra.mxu0 %v759
        %777 = vmatprep.subr.bf16.mxu0 0
        %778 = vmatpush2.bf16.xpose.msra.mxu0 0
        %779 = vmatprep.subr.bf16.mxu0 0
        %780 = vmatpush2.bf16.xpose.msra.mxu0 0
        %781 = vmatprep.subr.bf16.mxu0 0
        %782 = vmatpush2.bf16.xpose.msra.mxu0 0
        %783 = vmatprep.subr.bf16.mxu0 0
        %784 = vmatpush2.bf16.xpose.msra.mxu0 0
        %785 = vmatprep.subr.bf16.mxu0 0
        %786 = vmatpush2.bf16.xpose.msra.mxu0 0
        %787 = vmatprep.subr.bf16.mxu0 0
        %788 = vmatpush2.bf16.xpose.msra.mxu0 0
        %789 = vmatprep.subr.bf16.mxu0 0
        %790 = vmatpush2.bf16.xpose.msra.mxu0 0
        %791 = vmatprep.subr.bf16.mxu0 0
        %792 = vmatpush2.bf16.xpose.msra.mxu0 0
        %793 = vmatprep.mubr.bf16.mxu0 0
        %794 = vmatmul.mubr.bf16.gmra.mxu0 %v756
        %v795 = vpop.f32.mrf.mxu0
        %v796 = vadd.f32 0.0, %v795
        %v797 = vpop.f32.mrf.mxu0
        %v798 = vpop.f32.mrf.mxu0
        %v799 = vpop.f32.mrf.mxu0
        %800 = vdwg.mxu0
        %802 = vrot.lane.b32.xlu0 %v652, 96
        %v803 = vpop.permute.xlu0 %802
        %v805 = vsel %vm656, %v652, 0
        %v808 = vsel %vm656, %v803, 0
        %810 = vmatprep.subr.bf16.mxu0 0
        %811 = vmatpush1.bf16.xpose.msra.mxu0 0
        %812 = vmatprep.subr.bf16.mxu0 0
        %813 = vmatpush1.bf16.xpose.msra.mxu0 0
        %814 = vmatprep.subr.bf16.mxu0 0
        %815 = vmatpush1.bf16.xpose.msra.mxu0 0
        %816 = vmatprep.subr.bf16.mxu0 0
        %817 = vmatpush1.bf16.xpose.msra.mxu0 0
        %818 = vmatprep.subr.bf16.mxu0 0
        %819 = vmatpush1.bf16.xpose.msra.mxu0 0
        %820 = vmatprep.subr.bf16.mxu0 0
        %821 = vmatpush1.bf16.xpose.msra.mxu0 0
        %822 = vmatprep.subr.bf16.mxu0 0
        %823 = vmatpush1.bf16.xpose.msra.mxu0 0
        %824 = vmatprep.subr.bf16.mxu0 0
        %825 = vmatpush1.bf16.xpose.msra.mxu0 %v808
        %826 = vmatprep.subr.bf16.mxu0 0
        %827 = vmatpush2.bf16.xpose.msra.mxu0 0
        %828 = vmatprep.subr.bf16.mxu0 0
        %829 = vmatpush2.bf16.xpose.msra.mxu0 0
        %830 = vmatprep.subr.bf16.mxu0 0
        %831 = vmatpush2.bf16.xpose.msra.mxu0 0
        %832 = vmatprep.subr.bf16.mxu0 0
        %833 = vmatpush2.bf16.xpose.msra.mxu0 0
        %834 = vmatprep.subr.bf16.mxu0 0
        %835 = vmatpush2.bf16.xpose.msra.mxu0 0
        %836 = vmatprep.subr.bf16.mxu0 0
        %837 = vmatpush2.bf16.xpose.msra.mxu0 0
        %838 = vmatprep.subr.bf16.mxu0 0
        %839 = vmatpush2.bf16.xpose.msra.mxu0 0
        %840 = vmatprep.subr.bf16.mxu0 0
        %841 = vmatpush2.bf16.xpose.msra.mxu0 0
        %842 = vmatprep.mubr.bf16.mxu0 0
        %843 = vmatmul.mubr.bf16.gmra.mxu0 %v805
        %v844 = vpop.f32.mrf.mxu0
        %v845 = vadd.f32 0.0, %v844
        %v846 = vpop.f32.mrf.mxu0
        %v847 = vpop.f32.mrf.mxu0
        %v848 = vpop.f32.mrf.mxu0
        %849 = vdwg.mxu0
        %v850 = vmul.f32 %v698, 0.35355338
        %v851 = vmul.f32 %v747, 0.35355338
        %v852 = vmul.f32 %v796, 0.35355338
        %v853 = vmul.f32 %v845, 0.35355338
        %v854 = vld [vmem:[#allocation5] sm:$0xff]
        %v855 = vadd.f32 %v850, %v854
        %v856 = vadd.f32 %v851, %v854
        %v857 = vadd.f32 %v852, %v854
        %v858 = vadd.f32 %v853, %v854
        %v859 = vsel %vm656, %v855, -inf
        %860 = vmax.xlane.f32.xlu0 %v859
        %v861 = vpop.xlane.xlu0 %860
        %v862 = vsel %vm656, %v856, -inf
        %863 = vmax.xlane.f32.xlu0 %v862
        %v864 = vpop.xlane.xlu0 %863
        %v865 = vsel %vm656, %v857, -inf
        %866 = vmax.xlane.f32.xlu0 %v865
        %v867 = vpop.xlane.xlu0 %866
        %v868 = vsel %vm656, %v858, -inf
        %869 = vmax.xlane.f32.xlu0 %v868
        %v870 = vpop.xlane.xlu0 %869
        %v871 = vsub.f32 %v855, %v861
        %v872 = vsub.f32 %v856, %v864
        %v873 = vsub.f32 %v857, %v867
        %v874 = vsub.f32 %v858, %v870
        %v875 = vmul.f32 %v871, 1.442695
        %v876 = vpow.pop %v875
        %v877 = vmul.f32 %v872, 1.442695
        %v878 = vpow.pop %v877
        %v879 = vmul.f32 %v873, 1.442695
        %v880 = vpow.pop %v879
        %v881 = vmul.f32 %v874, 1.442695
        %v882 = vpow.pop %v881
        %v883 = vsel %vm656, %v876, 0.0
        %884 = vadd.xlane.f32.xlu0 %v883
        %v885 = vpop.xlane.xlu0 %884
        %v886 = vsel %vm656, %v878, 0.0
        %887 = vadd.xlane.f32.xlu0 %v886
        %v888 = vpop.xlane.xlu0 %887
        %v889 = vsel %vm656, %v880, 0.0
        %890 = vadd.xlane.f32.xlu0 %v889
        %v891 = vpop.xlane.xlu0 %890
        %v892 = vsel %vm656, %v882, 0.0
        %893 = vadd.xlane.f32.xlu0 %v892
        %v894 = vpop.xlane.xlu0 %893
        %v895 = vrcp.pop %v885
        %v896 = vrcp.pop %v888
        %v897 = vrcp.pop %v891
        %v898 = vrcp.pop %v894
        %v899 = vmul.f32 %v876, %v895
        %v900 = vmul.f32 %v878, %v896
        %v901 = vmul.f32 %v880, %v897
        %v902 = vmul.f32 %v882, %v898
        %v903 = vpack.c.bf16 %v899, %v899
        %v904 = vpack.c.bf16 %v900, %v900
        %v905 = vpack.c.bf16 %v901, %v901
        %v906 = vpack.c.bf16 %v902, %v902
        %907 = vrot.lane.b32.xlu0 %v649, 64
        %v908 = vpop.permute.xlu0 %907
        %v910 = vsel %vm656, %v903, 0
        %vm912 = vcmask 1043456
        %v914 = vsel %vm912, %v908, 0
        %916 = vmatprep.subr.bf16.mxu0 0
        %917 = vmatpush1.bf16.msra.mxu0 0
        %918 = vmatprep.subr.bf16.mxu0 0
        %919 = vmatpush1.bf16.msra.mxu0 0
        %920 = vmatprep.subr.bf16.mxu0 0
        %921 = vmatpush1.bf16.msra.mxu0 0
        %922 = vmatprep.subr.bf16.mxu0 0
        %923 = vmatpush1.bf16.msra.mxu0 0
        %924 = vmatprep.subr.bf16.mxu0 0
        %925 = vmatpush1.bf16.msra.mxu0 0
        %926 = vmatprep.subr.bf16.mxu0 0
        %927 = vmatpush1.bf16.msra.mxu0 0
        %928 = vmatprep.subr.bf16.mxu0 0
        %929 = vmatpush1.bf16.msra.mxu0 0
        %930 = vmatprep.subr.bf16.mxu0 0
        %931 = vmatpush1.bf16.msra.mxu0 %v914
        %932 = vmatprep.subr.bf16.mxu0 0
        %933 = vmatpush2.bf16.msra.mxu0 0
        %934 = vmatprep.subr.bf16.mxu0 0
        %935 = vmatpush2.bf16.msra.mxu0 0
        %936 = vmatprep.subr.bf16.mxu0 0
        %937 = vmatpush2.bf16.msra.mxu0 0
        %938 = vmatprep.subr.bf16.mxu0 0
        %939 = vmatpush2.bf16.msra.mxu0 0
        %940 = vmatprep.subr.bf16.mxu0 0
        %941 = vmatpush2.bf16.msra.mxu0 0
        %942 = vmatprep.subr.bf16.mxu0 0
        %943 = vmatpush2.bf16.msra.mxu0 0
        %944 = vmatprep.subr.bf16.mxu0 0
        %945 = vmatpush2.bf16.msra.mxu0 0
        %946 = vmatprep.subr.bf16.mxu0 0
        %947 = vmatpush2.bf16.msra.mxu0 0
        %948 = vmatprep.mubr.bf16.mxu0 0
        %949 = vmatmul.mubr.bf16.gmra.mxu0 %v910
        %v950 = vpop.f32.mrf.mxu0
        %v951 = vadd.f32 0.0, %v950
        %v952 = vpop.f32.mrf.mxu0
        %v953 = vpop.f32.mrf.mxu0
        %v954 = vpop.f32.mrf.mxu0
        %955 = vdwg.mxu0
        %956 = vrot.lane.b32.xlu0 %v650, 64
        %v957 = vpop.permute.xlu0 %956
        %v959 = vsel %vm656, %v904, 0
        %v962 = vsel %vm912, %v957, 0
        %964 = vmatprep.subr.bf16.mxu0 0
        %965 = vmatpush1.bf16.msra.mxu0 0
        %966 = vmatprep.subr.bf16.mxu0 0
        %967 = vmatpush1.bf16.msra.mxu0 0
        %968 = vmatprep.subr.bf16.mxu0 0
        %969 = vmatpush1.bf16.msra.mxu0 0
        %970 = vmatprep.subr.bf16.mxu0 0
        %971 = vmatpush1.bf16.msra.mxu0 0
        %972 = vmatprep.subr.bf16.mxu0 0
        %973 = vmatpush1.bf16.msra.mxu0 0
        %974 = vmatprep.subr.bf16.mxu0 0
        %975 = vmatpush1.bf16.msra.mxu0 0
        %976 = vmatprep.subr.bf16.mxu0 0
        %977 = vmatpush1.bf16.msra.mxu0 0
        %978 = vmatprep.subr.bf16.mxu0 0
        %979 = vmatpush1.bf16.msra.mxu0 %v962
        %980 = vmatprep.subr.bf16.mxu0 0
        %981 = vmatpush2.bf16.msra.mxu0 0
        %982 = vmatprep.subr.bf16.mxu0 0
        %983 = vmatpush2.bf16.msra.mxu0 0
        %984 = vmatprep.subr.bf16.mxu0 0
        %985 = vmatpush2.bf16.msra.mxu0 0
        %986 = vmatprep.subr.bf16.mxu0 0
        %987 = vmatpush2.bf16.msra.mxu0 0
        %988 = vmatprep.subr.bf16.mxu0 0
        %989 = vmatpush2.bf16.msra.mxu0 0
        %990 = vmatprep.subr.bf16.mxu0 0
        %991 = vmatpush2.bf16.msra.mxu0 0
        %992 = vmatprep.subr.bf16.mxu0 0
        %993 = vmatpush2.bf16.msra.mxu0 0
        %994 = vmatprep.subr.bf16.mxu0 0
        %995 = vmatpush2.bf16.msra.mxu0 0
        %996 = vmatprep.mubr.bf16.mxu0 0
        %997 = vmatmul.mubr.bf16.gmra.mxu0 %v959
        %v998 = vpop.f32.mrf.mxu0
        %v999 = vadd.f32 0.0, %v998
        %v1000 = vpop.f32.mrf.mxu0
        %v1001 = vpop.f32.mrf.mxu0
        %v1002 = vpop.f32.mrf.mxu0
        %1003 = vdwg.mxu0
        %1004 = vrot.lane.b32.xlu0 %v651, 64
        %v1005 = vpop.permute.xlu0 %1004
        %v1007 = vsel %vm656, %v905, 0
        %v1010 = vsel %vm912, %v1005, 0
        %1012 = vmatprep.subr.bf16.mxu0 0
        %1013 = vmatpush1.bf16.msra.mxu0 0
        %1014 = vmatprep.subr.bf16.mxu0 0
        %1015 = vmatpush1.bf16.msra.mxu0 0
        %1016 = vmatprep.subr.bf16.mxu0 0
        %1017 = vmatpush1.bf16.msra.mxu0 0
        %1018 = vmatprep.subr.bf16.mxu0 0
        %1019 = vmatpush1.bf16.msra.mxu0 0
        %1020 = vmatprep.subr.bf16.mxu0 0
        %1021 = vmatpush1.bf16.msra.mxu0 0
        %1022 = vmatprep.subr.bf16.mxu0 0
        %1023 = vmatpush1.bf16.msra.mxu0 0
        %1024 = vmatprep.subr.bf16.mxu0 0
        %1025 = vmatpush1.bf16.msra.mxu0 0
        %1026 = vmatprep.subr.bf16.mxu0 0
        %1027 = vmatpush1.bf16.msra.mxu0 %v1010
        %1028 = vmatprep.subr.bf16.mxu0 0
        %1029 = vmatpush2.bf16.msra.mxu0 0
        %1030 = vmatprep.subr.bf16.mxu0 0
        %1031 = vmatpush2.bf16.msra.mxu0 0
        %1032 = vmatprep.subr.bf16.mxu0 0
        %1033 = vmatpush2.bf16.msra.mxu0 0
        %1034 = vmatprep.subr.bf16.mxu0 0
        %1035 = vmatpush2.bf16.msra.mxu0 0
        %1036 = vmatprep.subr.bf16.mxu0 0
        %1037 = vmatpush2.bf16.msra.mxu0 0
        %1038 = vmatprep.subr.bf16.mxu0 0
        %1039 = vmatpush2.bf16.msra.mxu0 0
        %1040 = vmatprep.subr.bf16.mxu0 0
        %1041 = vmatpush2.bf16.msra.mxu0 0
        %1042 = vmatprep.subr.bf16.mxu0 0
        %1043 = vmatpush2.bf16.msra.mxu0 0
        %1044 = vmatprep.mubr.bf16.mxu0 0
        %1045 = vmatmul.mubr.bf16.gmra.mxu0 %v1007
        %v1046 = vpop.f32.mrf.mxu0
        %v1047 = vadd.f32 0.0, %v1046
        %v1048 = vpop.f32.mrf.mxu0
        %v1049 = vpop.f32.mrf.mxu0
        %v1050 = vpop.f32.mrf.mxu0
        %1051 = vdwg.mxu0
        %1052 = vrot.lane.b32.xlu0 %v652, 64
        %v1053 = vpop.permute.xlu0 %1052
        %v1055 = vsel %vm656, %v906, 0
        %v1058 = vsel %vm912, %v1053, 0
        %1060 = vmatprep.subr.bf16.mxu0 0
        %1061 = vmatpush1.bf16.msra.mxu0 0
        %1062 = vmatprep.subr.bf16.mxu0 0
        %1063 = vmatpush1.bf16.msra.mxu0 0
        %1064 = vmatprep.subr.bf16.mxu0 0
        %1065 = vmatpush1.bf16.msra.mxu0 0
        %1066 = vmatprep.subr.bf16.mxu0 0
        %1067 = vmatpush1.bf16.msra.mxu0 0
        %1068 = vmatprep.subr.bf16.mxu0 0
        %1069 = vmatpush1.bf16.msra.mxu0 0
        %1070 = vmatprep.subr.bf16.mxu0 0
        %1071 = vmatpush1.bf16.msra.mxu0 0
        %1072 = vmatprep.subr.bf16.mxu0 0
        %1073 = vmatpush1.bf16.msra.mxu0 0
        %1074 = vmatprep.subr.bf16.mxu0 0
        %1075 = vmatpush1.bf16.msra.mxu0 %v1058
        %1076 = vmatprep.subr.bf16.mxu0 0
        %1077 = vmatpush2.bf16.msra.mxu0 0
        %1078 = vmatprep.subr.bf16.mxu0 0
        %1079 = vmatpush2.bf16.msra.mxu0 0
        %1080 = vmatprep.subr.bf16.mxu0 0
        %1081 = vmatpush2.bf16.msra.mxu0 0
        %1082 = vmatprep.subr.bf16.mxu0 0
        %1083 = vmatpush2.bf16.msra.mxu0 0
        %1084 = vmatprep.subr.bf16.mxu0 0
        %1085 = vmatpush2.bf16.msra.mxu0 0
        %1086 = vmatprep.subr.bf16.mxu0 0
        %1087 = vmatpush2.bf16.msra.mxu0 0
        %1088 = vmatprep.subr.bf16.mxu0 0
        %1089 = vmatpush2.bf16.msra.mxu0 0
        %1090 = vmatprep.subr.bf16.mxu0 0
        %1091 = vmatpush2.bf16.msra.mxu0 0
        %1092 = vmatprep.mubr.bf16.mxu0 0
        %1093 = vmatmul.mubr.bf16.gmra.mxu0 %v1055
        %v1094 = vpop.f32.mrf.mxu0
        %v1095 = vadd.f32 0.0, %v1094
        %v1096 = vpop.f32.mrf.mxu0
        %v1097 = vpop.f32.mrf.mxu0
        %v1098 = vpop.f32.mrf.mxu0
        %1099 = vdwg.mxu0
        %1101 = vrot.lane.b32.xlu0 %v999, 8
        %v1102 = vpop.permute.xlu0 %1101
        %1105 = vrot.lane.b32.xlu0 %v1047, 16
        %v1106 = vpop.permute.xlu0 %1105
        %1109 = vrot.lane.b32.xlu0 %v1095, 24
        %v1110 = vpop.permute.xlu0 %1109
        %v1112 = vsel %vm656, %v951, %v1102
        %vm1113 = vcmask 130048
        %v1114 = vsel %vm1113, %v1112, %v1106
        %vm1115 = vcmask 195584
        %v1116 = vsel %vm1115, %v1114, %v1110
        %v1117 = vpack.c.bf16 %v1116, %v1116
        %v1118 = vld [vmem:[%s5] sm:$0xf]
        %v1119 = vld [vmem:[%s5 + $0x4] sm:$0xf]
        %v1120 = vld [vmem:[%s5 + $0x8] sm:$0xf]
        %v1121 = vld [vmem:[%s5 + $0xc] sm:$0xf]
        %v1122 = vld [vmem:[#allocation8] sm:$0x1]
        %v1124 = vlaneseq
        %v1125 = vshrl.u32 %v1124, 7
        %v1126 = vsub.s32 0, %v1125
        %v1127 = vrot.slane %v1122, %v1126
        %v1133 = vunpack.c.l.b16 %v1118
        %v1134 = vunpack.c.l.b16 %v1119
        %v1135 = vunpack.c.l.b16 %v1120
        %v1136 = vunpack.c.l.b16 %v1121
        %v1137 = vpack.c.b16 %v1134, %v1133
        %v1138 = vpack.c.b16 %v1136, %v1135
        %v1142 = vsel %vm595, %v1117, 0
        %1144 = vmatprep.subr.bf16.mxu0 0
        %1145 = vmatpush1.bf16.msra.mxu0 0
        %1146 = vmatprep.subr.bf16.mxu0 0
        %1147 = vmatpush1.bf16.msra.mxu0 0
        %1148 = vmatprep.subr.bf16.mxu0 0
        %1149 = vmatpush1.bf16.msra.mxu0 0
        %1150 = vmatprep.subr.bf16.mxu0 0
        %1151 = vmatpush1.bf16.msra.mxu0 0
        %1152 = vmatprep.subr.bf16.mxu0 0
        %1153 = vmatpush1.bf16.msra.mxu0 0
        %1154 = vmatprep.subr.bf16.mxu0 0
        %1155 = vmatpush1.bf16.msra.mxu0 0
        %1156 = vmatprep.subr.bf16.mxu0 0
        %1157 = vmatpush1.bf16.msra.mxu0 %v1138
        %1158 = vmatprep.subr.bf16.mxu0 0
        %1159 = vmatpush1.bf16.msra.mxu0 %v1137
        %1160 = vmatprep.subr.bf16.mxu0 0
        %1161 = vmatpush2.bf16.msra.mxu0 0
        %1162 = vmatprep.subr.bf16.mxu0 0
        %1163 = vmatpush2.bf16.msra.mxu0 0
        %1164 = vmatprep.subr.bf16.mxu0 0
        %1165 = vmatpush2.bf16.msra.mxu0 0
        %1166 = vmatprep.subr.bf16.mxu0 0
        %1167 = vmatpush2.bf16.msra.mxu0 0
        %1168 = vmatprep.subr.bf16.mxu0 0
        %1169 = vmatpush2.bf16.msra.mxu0 0
        %1170 = vmatprep.subr.bf16.mxu0 0
        %1171 = vmatpush2.bf16.msra.mxu0 0
        %1172 = vmatprep.subr.bf16.mxu0 0
        %1173 = vmatpush2.bf16.msra.mxu0 0
        %1174 = vmatprep.subr.bf16.mxu0 0
        %1175 = vmatpush2.bf16.msra.mxu0 0
        %1176 = vmatprep.mubr.bf16.mxu0 0
        %1177 = vmatmul.mubr.bf16.gmra.mxu0 %v1142
        %v1178 = vpop.f32.mrf.mxu0
        %v1179 = vadd.f32 %v1127, %v1178
        %v1180 = vpop.f32.mrf.mxu0
        %v1181 = vpop.f32.mrf.mxu0
        %v1182 = vpop.f32.mrf.mxu0
        %1183 = vdwg.mxu0
        %v1184 = vadd.f32 %v570, %v1179
        %v1185 = vld [vmem:[#allocation10] sm:$0x1]
        %v1186 = vld [vmem:[#allocation11] sm:$0x1]
        %v1187 = vsel %vm595, %v1184, 0.0
        %1188 = vadd.xlane.f32.xlu0 %v1187
        %v1189 = vpop.xlane.xlu0 %1188
        %v1190 = vrcp.pop 32.0
        %v1191 = vmul.f32 %v1189, %v1190
        %v1192 = vmul.f32 %v1184, %v1184
        %v1193 = vsel %vm595, %v1192, 0.0
        %1194 = vadd.xlane.f32.xlu0 %v1193
        %v1195 = vpop.xlane.xlu0 %1194
        %v1196 = vmul.f32 %v1195, %v1190
        %v1197 = vmul.f32 %v1191, %v1191
        %v1198 = vsub.f32 %v1196, %v1197
        %v1199 = vmax.f32 %v1198, 0.0
        %v1200 = vsub.f32 %v1184, %v1191
        %v1201 = vadd.f32 %v1199, 1e-05
        %v1202 = vrsqrt.pop %v1201
        %v1203 = vmul.f32 %v1200, %v1202
        %v1205 = vlaneseq
        %v1206 = vshrl.u32 %v1205, 7
        %v1207 = vsub.s32 0, %v1206
        %v1208 = vrot.slane %v1185, %v1207
        %v1210 = vmul.f32 %v1203, %v1208
        %v1212 = vlaneseq
        %v1213 = vshrl.u32 %v1212, 7
        %v1214 = vsub.s32 0, %v1213
        %v1215 = vrot.slane %v1186, %v1214
        %v1217 = vadd.f32 %v1210, %v1215
        %v1218 = vpack.c.bf16 %v1217, %v1217
        %v1219 = vld [vmem:[%s9] sm:$0xf]
        %v1220 = vld [vmem:[%s9 + $0x4] sm:$0xf]
        %v1221 = vld [vmem:[%s9 + $0x8] sm:$0xf]
        %v1222 = vld [vmem:[%s9 + $0xc] sm:$0xf]
        %v1223 = vld [vmem:[%s10] sm:$0x1]
        %v1225 = vlaneseq
        %v1226 = vshrl.u32 %v1225, 7
        %v1227 = vsub.s32 0, %v1226
        %v1228 = vrot.slane %v1223, %v1227
        %v1234 = vunpack.c.l.b16 %v1219
        %v1235 = vunpack.c.l.b16 %v1220
        %v1236 = vunpack.c.l.b16 %v1221
        %v1237 = vunpack.c.l.b16 %v1222
        %v1238 = vpack.c.b16 %v1235, %v1234
        %v1239 = vpack.c.b16 %v1237, %v1236
        %v1243 = vsel %vm595, %v1218, 0
        %1245 = vmatprep.subr.bf16.mxu0 0
        %1246 = vmatpush1.bf16.msra.mxu0 0
        %1247 = vmatprep.subr.bf16.mxu0 0
        %1248 = vmatpush1.bf16.msra.mxu0 0
        %1249 = vmatprep.subr.bf16.mxu0 0
        %1250 = vmatpush1.bf16.msra.mxu0 0
        %1251 = vmatprep.subr.bf16.mxu0 0
        %1252 = vmatpush1.bf16.msra.mxu0 0
        %1253 = vmatprep.subr.bf16.mxu0 0
        %1254 = vmatpush1.bf16.msra.mxu0 0
        %1255 = vmatprep.subr.bf16.mxu0 0
        %1256 = vmatpush1.bf16.msra.mxu0 0
        %1257 = vmatprep.subr.bf16.mxu0 0
        %1258 = vmatpush1.bf16.msra.mxu0 %v1239
        %1259 = vmatprep.subr.bf16.mxu0 0
        %1260 = vmatpush1.bf16.msra.mxu0 %v1238
        %1261 = vmatprep.subr.bf16.mxu0 0
        %1262 = vmatpush2.bf16.msra.mxu0 0
        %1263 = vmatprep.subr.bf16.mxu0 0
        %1264 = vmatpush2.bf16.msra.mxu0 0
        %1265 = vmatprep.subr.bf16.mxu0 0
        %1266 = vmatpush2.bf16.msra.mxu0 0
        %1267 = vmatprep.subr.bf16.mxu0 0
        %1268 = vmatpush2.bf16.msra.mxu0 0
        %1269 = vmatprep.subr.bf16.mxu0 0
        %1270 = vmatpush2.bf16.msra.mxu0 0
        %1271 = vmatprep.subr.bf16.mxu0 0
        %1272 = vmatpush2.bf16.msra.mxu0 0
        %1273 = vmatprep.subr.bf16.mxu0 0
        %1274 = vmatpush2.bf16.msra.mxu0 0
        %1275 = vmatprep.subr.bf16.mxu0 0
        %1276 = vmatpush2.bf16.msra.mxu0 0
        %1277 = vmatprep.mubr.bf16.mxu0 0
        %1278 = vmatmul.mubr.bf16.gmra.mxu0 %v1243
        %v1279 = vpop.f32.mrf.mxu0
        %v1280 = vadd.f32 %v1228, %v1279
        %v1281 = vpop.f32.mrf.mxu0
        %v1282 = vpop.f32.mrf.mxu0
        %v1283 = vpop.f32.mrf.mxu0
        %1284 = vdwg.mxu0
        %v1285 = vmax.f32 %v1280, 0.0
        %v1286 = vpack.c.bf16 %v1285, %v1285
        %v1287 = vld [vmem:[%s11] sm:$0xf]
        %v1288 = vld [vmem:[%s11 + $0x4] sm:$0xf]
        %v1289 = vld [vmem:[%s11 + $0x8] sm:$0xf]
        %v1290 = vld [vmem:[%s11 + $0xc] sm:$0xf]
        %v1291 = vld [vmem:[%s11 + $0x10] sm:$0xf]
        %v1292 = vld [vmem:[%s11 + $0x14] sm:$0xf]
        %v1293 = vld [vmem:[%s11 + $0x18] sm:$0xf]
        %v1294 = vld [vmem:[%s11 + $0x1c] sm:$0xf]
        %v1295 = vld [vmem:[%s12] sm:$0x1]
        %v1297 = vlaneseq
        %v1298 = vshrl.u32 %v1297, 7
        %v1299 = vsub.s32 0, %v1298
        %v1300 = vrot.slane %v1295, %v1299
        %v1310 = vunpack.c.l.b16 %v1287
        %v1311 = vunpack.c.l.b16 %v1288
        %v1312 = vunpack.c.l.b16 %v1289
        %v1313 = vunpack.c.l.b16 %v1290
        %v1314 = vunpack.c.l.b16 %v1291
        %v1315 = vunpack.c.l.b16 %v1292
        %v1316 = vunpack.c.l.b16 %v1293
        %v1317 = vunpack.c.l.b16 %v1294
        %v1318 = vpack.c.b16 %v1311, %v1310
        %v1319 = vpack.c.b16 %v1313, %v1312
        %v1320 = vpack.c.b16 %v1315, %v1314
        %v1321 = vpack.c.b16 %v1317, %v1316
        %vm1326 = vcmask 523264
        %v1328 = vsel %vm1326, %v1286, 0
        %1330 = vmatprep.subr.bf16.mxu0 0
        %1331 = vmatpush1.bf16.msra.mxu0 0
        %1332 = vmatprep.subr.bf16.mxu0 0
        %1333 = vmatpush1.bf16.msra.mxu0 0
        %1334 = vmatprep.subr.bf16.mxu0 0
        %1335 = vmatpush1.bf16.msra.mxu0 0
        %1336 = vmatprep.subr.bf16.mxu0 0
        %1337 = vmatpush1.bf16.msra.mxu0 0
        %1338 = vmatprep.subr.bf16.mxu0 0
        %1339 = vmatpush1.bf16.msra.mxu0 %v1321
        %1340 = vmatprep.subr.bf16.mxu0 0
        %1341 = vmatpush1.bf16.msra.mxu0 %v1320
        %1342 = vmatprep.subr.bf16.mxu0 0
        %1343 = vmatpush1.bf16.msra.mxu0 %v1319
        %1344 = vmatprep.subr.bf16.mxu0 0
        %1345 = vmatpush1.bf16.msra.mxu0 %v1318
        %1346 = vmatprep.subr.bf16.mxu0 0
        %1347 = vmatpush2.bf16.msra.mxu0 0
        %1348 = vmatprep.subr.bf16.mxu0 0
        %1349 = vmatpush2.bf16.msra.mxu0 0
        %1350 = vmatprep.subr.bf16.mxu0 0
        %1351 = vmatpush2.bf16.msra.mxu0 0
        %1352 = vmatprep.subr.bf16.mxu0 0
        %1353 = vmatpush2.bf16.msra.mxu0 0
        %1354 = vmatprep.subr.bf16.mxu0 0
        %1355 = vmatpush2.bf16.msra.mxu0 0
        %1356 = vmatprep.subr.bf16.mxu0 0
        %1357 = vmatpush2.bf16.msra.mxu0 0
        %1358 = vmatprep.subr.bf16.mxu0 0
        %1359 = vmatpush2.bf16.msra.mxu0 0
        %1360 = vmatprep.subr.bf16.mxu0 0
        %1361 = vmatpush2.bf16.msra.mxu0 0
        %1362 = vmatprep.mubr.bf16.mxu0 0
        %1363 = vmatmul.mubr.bf16.gmra.mxu0 %v1328
        %v1364 = vpop.f32.mrf.mxu0
        %v1365 = vadd.f32 %v1300, %v1364
        %v1366 = vpop.f32.mrf.mxu0
        %v1367 = vpop.f32.mrf.mxu0
        %v1368 = vpop.f32.mrf.mxu0
        %1369 = vdwg.mxu0
        %v1370 = vadd.f32 %v1217, %v1365
        %v1371 = vld [vmem:[%s13] sm:$0x1]
        %v1372 = vld [vmem:[%s14] sm:$0x1]
        %v1373 = vsel %vm595, %v1370, 0.0
        %1374 = vadd.xlane.f32.xlu0 %v1373
        %v1375 = vpop.xlane.xlu0 %1374
        %v1376 = vmul.f32 %v1375, %v1190
        %v1377 = vmul.f32 %v1370, %v1370
        %v1378 = vsel %vm595, %v1377, 0.0
        %1379 = vadd.xlane.f32.xlu0 %v1378
        %v1380 = vpop.xlane.xlu0 %1379
        %v1381 = vmul.f32 %v1380, %v1190
        %v1382 = vmul.f32 %v1376, %v1376
        %v1383 = vsub.f32 %v1381, %v1382
        %v1384 = vmax.f32 %v1383, 0.0
        %v1385 = vsub.f32 %v1370, %v1376
        %v1386 = vadd.f32 %v1384, 1e-05
        %v1387 = vrsqrt.pop %v1386
        %v1388 = vmul.f32 %v1385, %v1387
        %v1390 = vlaneseq
        %v1391 = vshrl.u32 %v1390, 7
        %v1392 = vsub.s32 0, %v1391
        %v1393 = vrot.slane %v1371, %v1392
        %v1395 = vmul.f32 %v1388, %v1393
        %v1397 = vlaneseq
        %v1398 = vshrl.u32 %v1397, 7
        %v1399 = vsub.s32 0, %v1398
        %v1400 = vrot.slane %v1372, %v1399
        %v1402 = vadd.f32 %v1395, %v1400
        %v1403 = vpack.c.bf16 %v1402, %v1402
        %vm1404 = vcmask 257024
        %1405 = vst.msk [vmem:[%s561] sm:$0xf] %vm1404, %v1403
        %s1406 = sand.u32 %s361, 1
        %s1407 = scalar_lea.sflag [#allocation4], %s1406
        %s1408 = sand.u32 %s361, 1
        %s1409 = smul.addr %s1408, 4
        %s1410 = scalar_lea.vmem [#allocation13], %s1409
        // Predicated region
        $region105: #{tpu_custom_call.1} parent=79 // pred_check
          %p1411 = pneg %p371
        $region106: #{tpu_custom_call.1} parent=79 // pred_check_branch
          %1413 = sbr.rel (%p1411) target = $region108
        $region107: #{tpu_custom_call.1} parent=79 // pred_region
          %s1415 = ssub.s32 64, 64
          %1416 = vsyncadd %s1407, %s1415
          %s1417 = smul.addr %s33, 64
          %s1418 = scalar_lea.hbm %s15, %s1417
          %s1420 = sshll.u32 %s1410, 4
          %s1421 = int_to_ptr.vmem [resolvable:$true] %s1420
          %1423 = dma.vmem_to_hbm [thread:$0]  %s1421, 64, %s1418, %s1407
        $region108: #{tpu_custom_call.1} parent=79 // pred_fallthru
          _
      $region80: #{tpu_custom_call.1} parent=5 // pred_fallthru
        _
      %p1424 = scmp.le.s32.totalorder 2, %s28
      // Predicated region
      $region109: #{tpu_custom_call.1} parent=5 // pred_check
        %p1425 = pneg %p1424
      $region110: #{tpu_custom_call.1} parent=5 // pred_check_branch
        %1427 = sbr.rel (%p1425) target = $region112
      $region111: #{tpu_custom_call.1} parent=5 // pred_region
        %s1428 = ssub.s32 %s28, 2
        // Predicated region
        $region113: #{tpu_custom_call.1} parent=111 // pred_check
          %p1429 = pneg %p377
        $region114: #{tpu_custom_call.1} parent=111 // pred_check_branch
          %1431 = sbr.rel (%p1429) target = $region116
        $region115: #{tpu_custom_call.1} parent=111 // pred_region
          %s1432 = sand.u32 %s362, 1
          %s1433 = scalar_lea.sflag [#allocation4], %s1432
          %s1434 = sand.u32 %s362, 1
          %s1435 = smul.addr %s1434, 4
          %s1436 = scalar_lea.vmem [#allocation13], %s1435
          %1437 = dma.done %s1433, 64
        $region116: #{tpu_custom_call.1} parent=111 // pred_fallthru
          _
      $region112: #{tpu_custom_call.1} parent=5 // pred_fallthru
        _
    $region6: #{tpu_custom_call.1} parent=1 // loop_footer
      %s32 = sadd.s32 1, %s28
    $region7: #{tpu_custom_call.1} parent=1 // loop_footer_branch
      %27 = sbr.rel target = $region3
    $region8: #{tpu_custom_call.1} parent=1 // loop_exit
      _
    %1438 = vsyncpa [#allocation3], 1
    %s1439 = scalar_lea.sflag [#allocation3], 1
    %1440 = vsyncpa %s1439, 1
    %1441 = vsyncpa [#allocation6], 1
    %1442 = vsyncpa [#allocation9], 1
    %1443 = vsyncpa [#allocation12], 1
    %1444 = vsyncpa [#allocation4], 1
    %s1445 = scalar_lea.sflag [#allocation4], 1
    %1446 = vsyncpa %s1445, 1

</llo_original>
